<compile_context>
chip_gen: v6e
topology: v6e:2x2x1
jax: 0.10.0
libtpu: 0.0.40
codegen_flags: <defaults>
</compile_context>

<pallas_src>
import numpy as np
import jax
import jax.numpy as jnp
from jax import lax
from jax.experimental import pallas as pl
from jax.experimental.pallas import tpu as pltpu

EPS_BN = 1e-5
SHARE_PLANES = 8


def _relu(h):
    return jnp.maximum(h, 0.0)


def _bn(h, gamma, beta):
    """Training-mode BatchNorm1d (batch stats, biased variance, eps=1e-5).

    Stats are taken over every leading axis (the full node/edge batch); works
    for 2-D (rows, D) and 3-D (K, rows, D) activations.  The leading-dim merge
    reshape is layout-preserving because rows % 8 == 0.
    """
    hf = h.reshape(-1, h.shape[-1])
    mu = jnp.mean(hf, axis=0, keepdims=True)
    msq = jnp.mean(hf * hf, axis=0, keepdims=True)
    var = jnp.maximum(msq - mu * mu, 0.0)
    return (h - mu) * lax.rsqrt(var + EPS_BN) * gamma + beta


def _reduce_lead(op, t):
    """Copy-free K-way reduction over the (static) leading axis of t."""
    acc = t[0]
    for k in range(1, t.shape[0]):
        acc = op(acc, t[k])
    return acc


def transformer_block_kernel(
    x_ref, pos_ref, src_ref,
    w_in_ref, g1_ref, b1_ref,
    w_qkv_ref, b_qkv_ref,
    w_p1_ref, b_p1_ref, gp_ref, bp_ref, w_p2_ref, b_p2_ref,
    ga_ref, ba_ref, w_a1_ref, b_a1_ref, ga1_ref, ba1_ref,
    w_a2_ref, b_a2_ref,
    w_out_ref, g2_ref, b2_ref, g3_ref, b3_ref,
    out_ref,
):
    f32 = jnp.float32
    bf16 = jnp.bfloat16

    x_skip = x_ref[...]                       # (N, C) f32
    pos = pos_ref[...]                        # (N, 3) f32
    src = src_ref[...]                        # (E, 1) i32, neighbor-major sources

    N, C = x_skip.shape
    E = src.shape[0]
    K = E // N                                # in-edges per destination node

    # ---- x = relu(bn1(lin_in(x))); bf16 MXU operands, f32 accumulation ----
    x1 = _relu(_bn(
        jnp.dot(x_skip.astype(bf16), w_in_ref[...], preferred_element_type=f32),
        g1_ref[...], b1_ref[...]))

    # ---- fused node-level projections [lin | lin_src | lin_dst] -> (N, 3C) ----
    proj = jnp.dot(x1.astype(bf16), w_qkv_ref[...],
                   preferred_element_type=f32) + b_qkv_ref[...]
    a_dst = proj[:, 2 * C:]                   # (N, C)

    # ---- source gather: one-hot built in registers (no dense HBM one-hot),
    #      two small bf16 MXU passes gather [x_lin | a_src] and pos rows.
    # TODO(synk): for large graphs replace with a per-block DMA row gather
    # (PrefetchScalarGridSpec + pl.Element index_map) to avoid O(E*N) work.
    onehot = jnp.where(
        lax.broadcasted_iota(jnp.int32, (E, N), 1) == src, 1.0, 0.0
    ).astype(bf16)                                                      # (E, N)
    feat_j = jnp.dot(onehot, proj[:, :2 * C].astype(bf16),
                     preferred_element_type=f32)                        # (E, 2C)
    posg = jnp.dot(onehot, pos.astype(bf16), preferred_element_type=f32)  # (E, 3)

    # Neighbor-major layout: edge k*N + n is the k-th in-edge of node n, so the
    # (K, N, .) leading-dim view makes destination-side features pure
    # broadcasts (no row concatenates / copies).
    x_j = feat_j[:, :C].reshape(K, N, C)
    a_j = feat_j[:, C:].reshape(K, N, C)
    pos_j = posg.reshape(K, N, 3)

    # ---- pos_nn: Lin(3,3) -> BN(3) -> ReLU -> Lin(3,C); 3-wide matmuls as VPU FMAs
    rel = pos_j - pos[None, :, :]                                       # (K, N, 3)
    w_p1 = w_p1_ref[...]
    h = (rel[..., 0:1] * w_p1[0:1, :] + rel[..., 1:2] * w_p1[1:2, :]
         + rel[..., 2:3] * w_p1[2:3, :]) + b_p1_ref[...]
    h = _relu(_bn(h, gp_ref[...], bp_ref[...]))
    w_p2 = w_p2_ref[...]
    delta = (h[..., 0:1] * w_p2[0:1, :] + h[..., 1:2] * w_p2[1:2, :]
             + h[..., 2:3] * w_p2[2:3, :]) + b_p2_ref[...]              # (K, N, C)

    # ---- attn_nn: BN(C) -> ReLU -> Lin(C,C/8) -> BN(C/8) -> ReLU -> Lin(C/8,C/8)
    # w_a2 / b_a2 arrive with their columns pre-tiled share_planes times, so the
    # last matmul directly emits lane-expanded logits (no jnp.tile of softmax).
    alpha = a_j - a_dst[None, :, :] + delta                             # (K, N, C)
    a = _relu(_bn(alpha, ga_ref[...], ba_ref[...]))
    a = jnp.dot(a.reshape(E, C).astype(bf16), w_a1_ref[...],
                preferred_element_type=f32) + b_a1_ref[...]             # (E, C/8)
    a = _relu(_bn(a, ga1_ref[...], ba1_ref[...]))
    logits = (jnp.dot(a.astype(bf16), w_a2_ref[...],
                      preferred_element_type=f32) + b_a2_ref[...]
              ).reshape(K, N, C)                                        # (K, N, C)

    # ---- PyG segment softmax over destinations: K-way leading-axis reduction
    seg_max = _reduce_lead(jnp.maximum, logits)                         # (N, C)
    ex = jnp.exp(logits - seg_max[None, :, :])                          # (K, N, C)
    seg_sum = _reduce_lead(jnp.add, ex)                                 # (N, C)
    inv = pl.reciprocal(seg_sum + 1e-16, approx=True)                   # (N, C)
    soft = ex * inv[None, :, :]                                         # (K, N, C)

    # ---- message * softmax, 'add' aggregation over the K in-edges per node
    y = _reduce_lead(jnp.add, (x_j + delta) * soft)                     # (N, C)

    # ---- tail: relu(bn2(y)); bn3(lin_out(.)); residual; relu ----
    x2 = _relu(_bn(y, g2_ref[...], b2_ref[...]))
    x3 = _bn(jnp.dot(x2.astype(bf16), w_out_ref[...], preferred_element_type=f32),
             g3_ref[...], b3_ref[...])
    out_ref[...] = _relu(x3 + x_skip)


def _vmem_limit_bytes():
    """Generation-aware VMEM budget: physical capacity minus ~16 MiB headroom."""
    try:
        cap = int(pltpu.get_tpu_info().vmem_capacity_bytes)
    except Exception:
        cap = 64 * 1024 * 1024
    return max(32 * 1024 * 1024, cap - 16 * 1024 * 1024)


def prepare_edges(edge_index, num_nodes):
    """One-time host-side edge preparation (no per-call device sync).

    Requires a fixed in-degree (kNN-style) graph: every node has exactly
    K = E // N incoming edges.  Returns the neighbor-major source vector of
    shape (E, 1): edge k*N + n is the k-th in-edge of node n.
    """
    ei = np.asarray(edge_index)
    src, dst = ei[0].astype(np.int64), ei[1].astype(np.int64)
    N = int(num_nodes)
    E = int(src.shape[0])
    if E % N != 0:
        raise ValueError("E must be a multiple of N (fixed in-degree kNN graph)")
    K = E // N
    counts = np.bincount(dst, minlength=N)
    if not np.all(counts == K):
        raise ValueError("every node must have exactly E // N incoming edges")
    order = np.argsort(dst, kind="stable")
    src_km = src[order].reshape(N, K).T.reshape(E)
    return jnp.asarray(src_km.reshape(E, 1), dtype=jnp.int32)


def prepare_params(params):
    """One-time parameter fusion / casting (keeps the jitted step launch-free).

    * lin / lin_src / lin_dst fold into one (C, 3C) projection.
    * attn_nn's last Lin(C/8, C/8) gets its columns tiled share_planes times so
      the kernel never lane-tiles the softmax weights.
    * MXU weights are cast to bf16; BN params / biases stay f32.
    """
    p = params
    bf16 = jnp.bfloat16
    w_qkv = jnp.concatenate([p["w_lin"], p["w_src"], p["w_dst"]], axis=1)
    b_qkv = jnp.concatenate([p["b_lin"], p["b_src"], p["b_dst"]], axis=1)
    w_a2x = jnp.tile(p["w_a2"], (1, SHARE_PLANES))
    b_a2x = jnp.tile(p["b_a2"], (1, SHARE_PLANES))
    return {
        "w_in": p["w_in"].astype(bf16), "g1": p["g1"], "b1": p["b1"],
        "w_qkv": w_qkv.astype(bf16), "b_qkv": b_qkv,
        "w_p1": p["w_p1"], "b_p1": p["b_p1"], "gp": p["gp"], "bp": p["bp"],
        "w_p2": p["w_p2"], "b_p2": p["b_p2"],
        "ga": p["ga"], "ba": p["ba"],
        "w_a1": p["w_a1"].astype(bf16), "b_a1": p["b_a1"],
        "ga1": p["ga1"], "ba1": p["ba1"],
        "w_a2": w_a2x.astype(bf16), "b_a2": b_a2x,
        "w_out": p["w_out"].astype(bf16),
        "g2": p["g2"], "b2": p["b2"], "g3": p["g3"], "b3": p["b3"],
    }


def _transformer_block_impl(x, pos, src_km, fp):
    N, C = x.shape
    E = src_km.shape[0]
    if N % 8 != 0:
        raise ValueError("N must be a multiple of 8 (f32 sublane tiling)")
    if E % N != 0:
        raise ValueError("E must be a multiple of N")

    inputs = [x, pos, src_km,
              fp["w_in"], fp["g1"], fp["b1"],
              fp["w_qkv"], fp["b_qkv"],
              fp["w_p1"], fp["b_p1"], fp["gp"], fp["bp"], fp["w_p2"], fp["b_p2"],
              fp["ga"], fp["ba"], fp["w_a1"], fp["b_a1"], fp["ga1"], fp["ba1"],
              fp["w_a2"], fp["b_a2"],
              fp["w_out"], fp["g2"], fp["b2"], fp["g3"], fp["b3"]]

    # Single un-gridded invocation: the whole problem is VMEM-resident and the
    # BatchNorm statistics are global over all nodes / edges (tiling would need
    # a two-pass / accumulated-stats design -- see TODOs at top of file).
    return pl.pallas_call(
        transformer_block_kernel,
        out_shape=jax.ShapeDtypeStruct((N, C), jnp.float32),
        in_specs=[pl.BlockSpec(memory_space=pltpu.MemorySpace.VMEM)] * len(inputs),
        out_specs=pl.BlockSpec(memory_space=pltpu.MemorySpace.VMEM),
        compiler_params=pltpu.CompilerParams(vmem_limit_bytes=_vmem_limit_bytes()),
    )(*inputs)


transformer_block = jax.jit(_transformer_block_impl)


def init_params(key, C):
    """Deterministic synthetic parameters. Linear weights stored as (in, out)
    (already transposed vs torch's (out, in)); 1-D params stored as (1, dim)."""
    C8 = C // SHARE_PLANES
    keys = iter(jax.random.split(key, 32))

    def w(shape, scale=0.2):
        return scale * jax.random.normal(next(keys), shape, dtype=jnp.float32)

    def bn_pair(dim):
        g = 1.0 + 0.1 * jax.random.normal(next(keys), (1, dim), dtype=jnp.float32)
        b = 0.1 * jax.random.normal(next(keys), (1, dim), dtype=jnp.float32)
        return g, b

    p = {}
    p["w_in"] = w((C, C))                                     # lin_in (bias=False)
    p["g1"], p["b1"] = bn_pair(C)                             # bn1
    p["w_lin"], p["b_lin"] = w((C, C)), w((1, C), 0.1)
    p["w_src"], p["b_src"] = w((C, C)), w((1, C), 0.1)
    p["w_dst"], p["b_dst"] = w((C, C)), w((1, C), 0.1)
    p["w_p1"], p["b_p1"] = w((3, 3), 0.5), w((1, 3), 0.1)     # pos_nn MLP Lin(3,3)
    p["gp"], p["bp"] = bn_pair(3)                             # pos_nn BN(3)
    p["w_p2"], p["b_p2"] = w((3, C), 0.3), w((1, C), 0.1)     # pos_nn Lin(3, C)
    p["ga"], p["ba"] = bn_pair(C)                             # attn BN(C)
    p["w_a1"], p["b_a1"] = w((C, C8)), w((1, C8), 0.1)        # attn Lin(C, C/8)
    p["ga1"], p["ba1"] = bn_pair(C8)                          # attn BN(C/8)
    p["w_a2"], p["b_a2"] = w((C8, C8), 0.3), w((1, C8), 0.1)  # attn Lin(C/8, C/8)
    p["w_out"] = w((C, C))                                    # lin_out (bias=False)
    p["g2"], p["b2"] = bn_pair(C)                             # bn2
    p["g3"], p["b3"] = bn_pair(C)                             # bn3
    return p


def reference_jax(x, pos, edge_index, params):
    """Pure-JAX f32 reference using gather/segment ops (correctness check)."""
    p = params
    src, dst = edge_index[0], edge_index[1]
    N, C = x.shape
    E = src.shape[0]
    C8 = C // SHARE_PLANES

    x1 = _relu(_bn(x @ p["w_in"], p["g1"], p["b1"]))
    x_lin = x1 @ p["w_lin"] + p["b_lin"]
    a_src = x1 @ p["w_src"] + p["b_src"]
    a_dst = x1 @ p["w_dst"] + p["b_dst"]

    pos_j, pos_i = pos[src], pos[dst]
    x_j, a_j, a_i = x_lin[src], a_src[src], a_dst[dst]

    rel = pos_j - pos_i
    h = _relu(_bn(rel @ p["w_p1"] + p["b_p1"], p["gp"], p["bp"]))
    delta = h @ p["w_p2"] + p["b_p2"]

    alpha = a_j - a_i + delta
    a = _relu(_bn(alpha, p["ga"], p["ba"]))
    a = a @ p["w_a1"] + p["b_a1"]
    a = _relu(_bn(a, p["ga1"], p["ba1"]))
    a = a @ p["w_a2"] + p["b_a2"]

    seg_max = jax.ops.segment_max(a, dst, num_segments=N)
    ex = jnp.exp(a - seg_max[dst])
    seg_sum = jax.ops.segment_sum(ex, dst, num_segments=N)
    soft = ex / (seg_sum[dst] + 1e-16)

    v = x_j + delta
    msg = (v.reshape(E, SHARE_PLANES, C8) * soft[:, None, :]).reshape(E, C)
    y = jax.ops.segment_sum(msg, dst, num_segments=N)

    x2 = _relu(_bn(y, p["g2"], p["b2"]))
    x3 = _bn(x2 @ p["w_out"], p["g3"], p["b3"])
    return _relu(x3 + x)


if __name__ == "__main__":
    N, C, K = 16, 32, 4            # nodes, channels (in == out), in-edges per node
    key = jax.random.PRNGKey(0)
    k_x, k_pos, k_params = jax.random.split(key, 3)

    x = jax.random.normal(k_x, (N, C), dtype=jnp.float32)
    pos = jax.random.normal(k_pos, (N, 3), dtype=jnp.float32)

    # deterministic "ring" kNN-style graph: node i receives from (i+1..i+K) mod N
    idx = np.arange(N, dtype=np.int32)
    dst = np.repeat(idx, K)
    src = (dst + np.tile(np.arange(1, K + 1, dtype=np.int32), N)) % N
    edge_index = np.stack([src, dst], axis=0)          # (2, E), E = 64

    params = init_params(k_params, C)

    # One-time preparation (host-side edge reorder + parameter fusion/casts).
    src_km = prepare_edges(edge_index, N)
    fparams = prepare_params(params)

    out = transformer_block(x, pos, src_km, fparams)
    out = jax.block_until_ready(out)

    # Tolerance accounts for bf16 MXU operands + approx softmax reciprocal.
    ref = reference_jax(x, pos, jnp.asarray(edge_index), params)
    if not bool(jnp.allclose(out, ref, rtol=4e-2, atol=4e-2)):
        raise AssertionError("Pallas kernel output mismatches pure-JAX reference")

    print("KERNEL_OK")
</pallas_src>

<mosaic_0001>
module attributes {stable_mosaic.version = 11 : i64} {
  func.func @transformer_block_kernel(%arg0: memref<16x32xf32, #tpu.memory_space<vmem>>, %arg1: memref<16x3xf32, #tpu.memory_space<vmem>>, %arg2: memref<64x1xi32, #tpu.memory_space<vmem>>, %arg3: memref<32x32xbf16, #tpu.memory_space<vmem>>, %arg4: memref<1x32xf32, #tpu.memory_space<vmem>>, %arg5: memref<1x32xf32, #tpu.memory_space<vmem>>, %arg6: memref<32x96xbf16, #tpu.memory_space<vmem>>, %arg7: memref<1x96xf32, #tpu.memory_space<vmem>>, %arg8: memref<3x3xf32, #tpu.memory_space<vmem>>, %arg9: memref<1x3xf32, #tpu.memory_space<vmem>>, %arg10: memref<1x3xf32, #tpu.memory_space<vmem>>, %arg11: memref<1x3xf32, #tpu.memory_space<vmem>>, %arg12: memref<3x32xf32, #tpu.memory_space<vmem>>, %arg13: memref<1x32xf32, #tpu.memory_space<vmem>>, %arg14: memref<1x32xf32, #tpu.memory_space<vmem>>, %arg15: memref<1x32xf32, #tpu.memory_space<vmem>>, %arg16: memref<32x4xbf16, #tpu.memory_space<vmem>>, %arg17: memref<1x4xf32, #tpu.memory_space<vmem>>, %arg18: memref<1x4xf32, #tpu.memory_space<vmem>>, %arg19: memref<1x4xf32, #tpu.memory_space<vmem>>, %arg20: memref<4x32xbf16, #tpu.memory_space<vmem>>, %arg21: memref<1x32xf32, #tpu.memory_space<vmem>>, %arg22: memref<32x32xbf16, #tpu.memory_space<vmem>>, %arg23: memref<1x32xf32, #tpu.memory_space<vmem>>, %arg24: memref<1x32xf32, #tpu.memory_space<vmem>>, %arg25: memref<1x32xf32, #tpu.memory_space<vmem>>, %arg26: memref<1x32xf32, #tpu.memory_space<vmem>>, %arg27: memref<16x32xf32, #tpu.memory_space<vmem>>) attributes {dimension_semantics = [], scalar_prefetch = 0 : i64, scratch_operands = 0 : i64, tpu.core_type = #tpu.core_type<tc>} {
    %c0 = arith.constant 0 : index
    %c0_0 = arith.constant 0 : index
    %0 = vector.load %arg0[%c0, %c0_0] : memref<16x32xf32, #tpu.memory_space<vmem>>, vector<16x32xf32>
    %c0_1 = arith.constant 0 : index
    %c0_2 = arith.constant 0 : index
    %1 = vector.load %arg1[%c0_1, %c0_2] : memref<16x3xf32, #tpu.memory_space<vmem>>, vector<16x3xf32>
    %c0_3 = arith.constant 0 : index
    %c0_4 = arith.constant 0 : index
    %2 = vector.load %arg2[%c0_3, %c0_4] : memref<64x1xi32, #tpu.memory_space<vmem>>, vector<64x1xi32>
    %3 = arith.truncf %0 : vector<16x32xf32> to vector<16x32xbf16>
    %c0_5 = arith.constant 0 : index
    %c0_6 = arith.constant 0 : index
    %4 = vector.load %arg3[%c0_5, %c0_6] : memref<32x32xbf16, #tpu.memory_space<vmem>>, vector<32x32xbf16>
    %cst = arith.constant dense<0.000000e+00> : vector<16x32xf32>
    %5 = tpu.matmul %3, %4, %cst {dimension_numbers = #tpu.dot_dimension_numbers<[1], [0], [0], [1], [0, 0, 1, 1], [], []>} : vector<16x32xbf16>, vector<32x32xbf16>, vector<16x32xf32> -> vector<16x32xf32>
    %c0_7 = arith.constant 0 : index
    %c0_8 = arith.constant 0 : index
    %6 = vector.load %arg4[%c0_7, %c0_8] : memref<1x32xf32, #tpu.memory_space<vmem>>, vector<1x32xf32>
    %c0_9 = arith.constant 0 : index
    %c0_10 = arith.constant 0 : index
    %7 = vector.load %arg5[%c0_9, %c0_10] : memref<1x32xf32, #tpu.memory_space<vmem>>, vector<1x32xf32>
    %cst_11 = arith.constant dense<0.000000e+00> : vector<32xf32>
    %8 = vector.multi_reduction <add>, %5, %cst_11 [0] : vector<16x32xf32> to vector<32xf32>
    %9 = vector.shape_cast %8 : vector<32xf32> to vector<1x32xf32>
    %cst_12 = arith.constant 1.600000e+01 : f32
    %10 = vector.broadcast %cst_12 : f32 to vector<1x32xf32>
    %11 = arith.divf %9, %10 : vector<1x32xf32>
    %12 = arith.mulf %5, %5 : vector<16x32xf32>
    %cst_13 = arith.constant dense<0.000000e+00> : vector<32xf32>
    %13 = vector.multi_reduction <add>, %12, %cst_13 [0] : vector<16x32xf32> to vector<32xf32>
    %14 = vector.shape_cast %13 : vector<32xf32> to vector<1x32xf32>
    %cst_14 = arith.constant 1.600000e+01 : f32
    %15 = vector.broadcast %cst_14 : f32 to vector<1x32xf32>
    %16 = arith.divf %14, %15 : vector<1x32xf32>
    %17 = arith.mulf %11, %11 : vector<1x32xf32>
    %18 = arith.subf %16, %17 : vector<1x32xf32>
    %cst_15 = arith.constant 0.000000e+00 : f32
    %19 = vector.broadcast %cst_15 : f32 to vector<1x32xf32>
    %20 = arith.maximumf %18, %19 : vector<1x32xf32>
    %21 = vector.broadcast %11 : vector<1x32xf32> to vector<16x32xf32>
    %22 = arith.subf %5, %21 : vector<16x32xf32>
    %cst_16 = arith.constant 9.99999974E-6 : f32
    %23 = vector.broadcast %cst_16 : f32 to vector<1x32xf32>
    %24 = arith.addf %20, %23 : vector<1x32xf32>
    %25 = math.rsqrt %24 : vector<1x32xf32>
    %26 = vector.broadcast %25 : vector<1x32xf32> to vector<16x32xf32>
    %27 = arith.mulf %22, %26 : vector<16x32xf32>
    %28 = vector.broadcast %6 : vector<1x32xf32> to vector<16x32xf32>
    %29 = arith.mulf %27, %28 : vector<16x32xf32>
    %30 = vector.broadcast %7 : vector<1x32xf32> to vector<16x32xf32>
    %31 = arith.addf %29, %30 : vector<16x32xf32>
    %cst_17 = arith.constant 0.000000e+00 : f32
    %32 = vector.broadcast %cst_17 : f32 to vector<16x32xf32>
    %33 = arith.maximumf %31, %32 : vector<16x32xf32>
    %34 = arith.truncf %33 : vector<16x32xf32> to vector<16x32xbf16>
    %c0_18 = arith.constant 0 : index
    %c0_19 = arith.constant 0 : index
    %35 = vector.load %arg6[%c0_18, %c0_19] : memref<32x96xbf16, #tpu.memory_space<vmem>>, vector<32x96xbf16>
    %cst_20 = arith.constant dense<0.000000e+00> : vector<16x96xf32>
    %36 = tpu.matmul %34, %35, %cst_20 {dimension_numbers = #tpu.dot_dimension_numbers<[1], [0], [0], [1], [0, 0, 1, 1], [], []>} : vector<16x32xbf16>, vector<32x96xbf16>, vector<16x96xf32> -> vector<16x96xf32>
    %c0_21 = arith.constant 0 : index
    %c0_22 = arith.constant 0 : index
    %37 = vector.load %arg7[%c0_21, %c0_22] : memref<1x96xf32, #tpu.memory_space<vmem>>, vector<1x96xf32>
    %38 = vector.broadcast %37 : vector<1x96xf32> to vector<16x96xf32>
    %39 = arith.addf %36, %38 : vector<16x96xf32>
    %40 = vector.extract_strided_slice %39 {offsets = [0, 64], sizes = [16, 32], strides = [1, 1]} : vector<16x96xf32> to vector<16x32xf32>
    %41 = tpu.iota {dimensions = array<i32: 1>} : vector<64x16xi32>
    %42 = vector.broadcast %2 : vector<64x1xi32> to vector<64x16xi32>
    %43 = arith.cmpi eq, %41, %42 : vector<64x16xi32>
    %cst_23 = arith.constant 1.000000e+00 : f32
    %cst_24 = arith.constant 0.000000e+00 : f32
    %44 = vector.broadcast %cst_23 : f32 to vector<64x16xf32>
    %45 = vector.broadcast %cst_24 : f32 to vector<64x16xf32>
    %46 = arith.select %43, %44, %45 : vector<64x16xi1>, vector<64x16xf32>
    %47 = arith.truncf %46 : vector<64x16xf32> to vector<64x16xbf16>
    %48 = vector.extract_strided_slice %39 {offsets = [0, 0], sizes = [16, 64], strides = [1, 1]} : vector<16x96xf32> to vector<16x64xf32>
    %49 = arith.truncf %48 : vector<16x64xf32> to vector<16x64xbf16>
    %cst_25 = arith.constant dense<0.000000e+00> : vector<64x64xf32>
    %50 = tpu.matmul %47, %49, %cst_25 {dimension_numbers = #tpu.dot_dimension_numbers<[1], [0], [0], [1], [0, 0, 1, 1], [], []>} : vector<64x16xbf16>, vector<16x64xbf16>, vector<64x64xf32> -> vector<64x64xf32>
    %51 = arith.truncf %1 : vector<16x3xf32> to vector<16x3xbf16>
    %cst_26 = arith.constant dense<0.000000e+00> : vector<64x3xf32>
    %52 = tpu.matmul %47, %51, %cst_26 {dimension_numbers = #tpu.dot_dimension_numbers<[1], [0], [0], [1], [0, 0, 1, 1], [], []>} : vector<64x16xbf16>, vector<16x3xbf16>, vector<64x3xf32> -> vector<64x3xf32>
    %53 = vector.extract_strided_slice %50 {offsets = [0, 0], sizes = [64, 32], strides = [1, 1]} : vector<64x64xf32> to vector<64x32xf32>
    %54 = vector.shape_cast %53 : vector<64x32xf32> to vector<4x16x32xf32>
    %55 = vector.extract_strided_slice %50 {offsets = [0, 32], sizes = [64, 32], strides = [1, 1]} : vector<64x64xf32> to vector<64x32xf32>
    %56 = vector.shape_cast %55 : vector<64x32xf32> to vector<4x16x32xf32>
    %57 = vector.shape_cast %52 : vector<64x3xf32> to vector<4x16x3xf32>
    %58 = vector.shape_cast %1 : vector<16x3xf32> to vector<1x16x3xf32>
    %59 = vector.broadcast %58 : vector<1x16x3xf32> to vector<4x16x3xf32>
    %60 = arith.subf %57, %59 : vector<4x16x3xf32>
    %c0_27 = arith.constant 0 : index
    %c0_28 = arith.constant 0 : index
    %61 = vector.load %arg8[%c0_27, %c0_28] : memref<3x3xf32, #tpu.memory_space<vmem>>, vector<3x3xf32>
    %62 = vector.extract_strided_slice %60 {offsets = [0, 0, 0], sizes = [4, 16, 1], strides = [1, 1, 1]} : vector<4x16x3xf32> to vector<4x16x1xf32>
    %63 = vector.extract_strided_slice %61 {offsets = [0, 0], sizes = [1, 3], strides = [1, 1]} : vector<3x3xf32> to vector<1x3xf32>
    %64 = vector.shape_cast %63 : vector<1x3xf32> to vector<1x1x3xf32>
    %65 = vector.broadcast %62 : vector<4x16x1xf32> to vector<4x16x3xf32>
    %66 = vector.broadcast %64 : vector<1x1x3xf32> to vector<4x16x3xf32>
    %67 = arith.mulf %65, %66 : vector<4x16x3xf32>
    %68 = vector.extract_strided_slice %60 {offsets = [0, 0, 1], sizes = [4, 16, 1], strides = [1, 1, 1]} : vector<4x16x3xf32> to vector<4x16x1xf32>
    %69 = vector.extract_strided_slice %61 {offsets = [1, 0], sizes = [1, 3], strides = [1, 1]} : vector<3x3xf32> to vector<1x3xf32>
    %70 = vector.shape_cast %69 : vector<1x3xf32> to vector<1x1x3xf32>
    %71 = vector.broadcast %68 : vector<4x16x1xf32> to vector<4x16x3xf32>
    %72 = vector.broadcast %70 : vector<1x1x3xf32> to vector<4x16x3xf32>
    %73 = arith.mulf %71, %72 : vector<4x16x3xf32>
    %74 = arith.addf %67, %73 : vector<4x16x3xf32>
    %75 = vector.extract_strided_slice %60 {offsets = [0, 0, 2], sizes = [4, 16, 1], strides = [1, 1, 1]} : vector<4x16x3xf32> to vector<4x16x1xf32>
    %76 = vector.extract_strided_slice %61 {offsets = [2, 0], sizes = [1, 3], strides = [1, 1]} : vector<3x3xf32> to vector<1x3xf32>
    %77 = vector.shape_cast %76 : vector<1x3xf32> to vector<1x1x3xf32>
    %78 = vector.broadcast %75 : vector<4x16x1xf32> to vector<4x16x3xf32>
    %79 = vector.broadcast %77 : vector<1x1x3xf32> to vector<4x16x3xf32>
    %80 = arith.mulf %78, %79 : vector<4x16x3xf32>
    %81 = arith.addf %74, %80 : vector<4x16x3xf32>
    %c0_29 = arith.constant 0 : index
    %c0_30 = arith.constant 0 : index
    %82 = vector.load %arg9[%c0_29, %c0_30] : memref<1x3xf32, #tpu.memory_space<vmem>>, vector<1x3xf32>
    %83 = vector.shape_cast %82 : vector<1x3xf32> to vector<1x1x3xf32>
    %84 = vector.broadcast %83 : vector<1x1x3xf32> to vector<4x16x3xf32>
    %85 = arith.addf %81, %84 : vector<4x16x3xf32>
    %c0_31 = arith.constant 0 : index
    %c0_32 = arith.constant 0 : index
    %86 = vector.load %arg10[%c0_31, %c0_32] : memref<1x3xf32, #tpu.memory_space<vmem>>, vector<1x3xf32>
    %c0_33 = arith.constant 0 : index
    %c0_34 = arith.constant 0 : index
    %87 = vector.load %arg11[%c0_33, %c0_34] : memref<1x3xf32, #tpu.memory_space<vmem>>, vector<1x3xf32>
    %88 = vector.shape_cast %85 : vector<4x16x3xf32> to vector<64x3xf32>
    %cst_35 = arith.constant dense<0.000000e+00> : vector<3xf32>
    %89 = vector.multi_reduction <add>, %88, %cst_35 [0] : vector<64x3xf32> to vector<3xf32>
    %90 = vector.shape_cast %89 : vector<3xf32> to vector<1x3xf32>
    %cst_36 = arith.constant 6.400000e+01 : f32
    %91 = vector.broadcast %cst_36 : f32 to vector<1x3xf32>
    %92 = arith.divf %90, %91 : vector<1x3xf32>
    %93 = arith.mulf %88, %88 : vector<64x3xf32>
    %cst_37 = arith.constant dense<0.000000e+00> : vector<3xf32>
    %94 = vector.multi_reduction <add>, %93, %cst_37 [0] : vector<64x3xf32> to vector<3xf32>
    %95 = vector.shape_cast %94 : vector<3xf32> to vector<1x3xf32>
    %cst_38 = arith.constant 6.400000e+01 : f32
    %96 = vector.broadcast %cst_38 : f32 to vector<1x3xf32>
    %97 = arith.divf %95, %96 : vector<1x3xf32>
    %98 = arith.mulf %92, %92 : vector<1x3xf32>
    %99 = arith.subf %97, %98 : vector<1x3xf32>
    %cst_39 = arith.constant 0.000000e+00 : f32
    %100 = vector.broadcast %cst_39 : f32 to vector<1x3xf32>
    %101 = arith.maximumf %99, %100 : vector<1x3xf32>
    %102 = vector.shape_cast %92 : vector<1x3xf32> to vector<1x1x3xf32>
    %103 = vector.broadcast %102 : vector<1x1x3xf32> to vector<4x16x3xf32>
    %104 = arith.subf %85, %103 : vector<4x16x3xf32>
    %cst_40 = arith.constant 9.99999974E-6 : f32
    %105 = vector.broadcast %cst_40 : f32 to vector<1x3xf32>
    %106 = arith.addf %101, %105 : vector<1x3xf32>
    %107 = math.rsqrt %106 : vector<1x3xf32>
    %108 = vector.shape_cast %107 : vector<1x3xf32> to vector<1x1x3xf32>
    %109 = vector.broadcast %108 : vector<1x1x3xf32> to vector<4x16x3xf32>
    %110 = arith.mulf %104, %109 : vector<4x16x3xf32>
    %111 = vector.shape_cast %86 : vector<1x3xf32> to vector<1x1x3xf32>
    %112 = vector.broadcast %111 : vector<1x1x3xf32> to vector<4x16x3xf32>
    %113 = arith.mulf %110, %112 : vector<4x16x3xf32>
    %114 = vector.shape_cast %87 : vector<1x3xf32> to vector<1x1x3xf32>
    %115 = vector.broadcast %114 : vector<1x1x3xf32> to vector<4x16x3xf32>
    %116 = arith.addf %113, %115 : vector<4x16x3xf32>
    %cst_41 = arith.constant 0.000000e+00 : f32
    %117 = vector.broadcast %cst_41 : f32 to vector<4x16x3xf32>
    %118 = arith.maximumf %116, %117 : vector<4x16x3xf32>
    %c0_42 = arith.constant 0 : index
    %c0_43 = arith.constant 0 : index
    %119 = vector.load %arg12[%c0_42, %c0_43] : memref<3x32xf32, #tpu.memory_space<vmem>>, vector<3x32xf32>
    %120 = vector.extract_strided_slice %118 {offsets = [0, 0, 0], sizes = [4, 16, 1], strides = [1, 1, 1]} : vector<4x16x3xf32> to vector<4x16x1xf32>
    %121 = vector.extract_strided_slice %119 {offsets = [0, 0], sizes = [1, 32], strides = [1, 1]} : vector<3x32xf32> to vector<1x32xf32>
    %122 = vector.shape_cast %121 : vector<1x32xf32> to vector<1x1x32xf32>
    %123 = vector.broadcast %120 : vector<4x16x1xf32> to vector<4x16x32xf32>
    %124 = vector.broadcast %122 : vector<1x1x32xf32> to vector<4x16x32xf32>
    %125 = arith.mulf %123, %124 : vector<4x16x32xf32>
    %126 = vector.extract_strided_slice %118 {offsets = [0, 0, 1], sizes = [4, 16, 1], strides = [1, 1, 1]} : vector<4x16x3xf32> to vector<4x16x1xf32>
    %127 = vector.extract_strided_slice %119 {offsets = [1, 0], sizes = [1, 32], strides = [1, 1]} : vector<3x32xf32> to vector<1x32xf32>
    %128 = vector.shape_cast %127 : vector<1x32xf32> to vector<1x1x32xf32>
    %129 = vector.broadcast %126 : vector<4x16x1xf32> to vector<4x16x32xf32>
    %130 = vector.broadcast %128 : vector<1x1x32xf32> to vector<4x16x32xf32>
    %131 = arith.mulf %129, %130 : vector<4x16x32xf32>
    %132 = arith.addf %125, %131 : vector<4x16x32xf32>
    %133 = vector.extract_strided_slice %118 {offsets = [0, 0, 2], sizes = [4, 16, 1], strides = [1, 1, 1]} : vector<4x16x3xf32> to vector<4x16x1xf32>
    %134 = vector.extract_strided_slice %119 {offsets = [2, 0], sizes = [1, 32], strides = [1, 1]} : vector<3x32xf32> to vector<1x32xf32>
    %135 = vector.shape_cast %134 : vector<1x32xf32> to vector<1x1x32xf32>
    %136 = vector.broadcast %133 : vector<4x16x1xf32> to vector<4x16x32xf32>
    %137 = vector.broadcast %135 : vector<1x1x32xf32> to vector<4x16x32xf32>
    %138 = arith.mulf %136, %137 : vector<4x16x32xf32>
    %139 = arith.addf %132, %138 : vector<4x16x32xf32>
    %c0_44 = arith.constant 0 : index
    %c0_45 = arith.constant 0 : index
    %140 = vector.load %arg13[%c0_44, %c0_45] : memref<1x32xf32, #tpu.memory_space<vmem>>, vector<1x32xf32>
    %141 = vector.shape_cast %140 : vector<1x32xf32> to vector<1x1x32xf32>
    %142 = vector.broadcast %141 : vector<1x1x32xf32> to vector<4x16x32xf32>
    %143 = arith.addf %139, %142 : vector<4x16x32xf32>
    %144 = vector.shape_cast %40 : vector<16x32xf32> to vector<1x16x32xf32>
    %145 = vector.broadcast %144 : vector<1x16x32xf32> to vector<4x16x32xf32>
    %146 = arith.subf %56, %145 : vector<4x16x32xf32>
    %147 = arith.addf %146, %143 : vector<4x16x32xf32>
    %c0_46 = arith.constant 0 : index
    %c0_47 = arith.constant 0 : index
    %148 = vector.load %arg14[%c0_46, %c0_47] : memref<1x32xf32, #tpu.memory_space<vmem>>, vector<1x32xf32>
    %c0_48 = arith.constant 0 : index
    %c0_49 = arith.constant 0 : index
    %149 = vector.load %arg15[%c0_48, %c0_49] : memref<1x32xf32, #tpu.memory_space<vmem>>, vector<1x32xf32>
    %150 = vector.shape_cast %147 : vector<4x16x32xf32> to vector<64x32xf32>
    %cst_50 = arith.constant dense<0.000000e+00> : vector<32xf32>
    %151 = vector.multi_reduction <add>, %150, %cst_50 [0] : vector<64x32xf32> to vector<32xf32>
    %152 = vector.shape_cast %151 : vector<32xf32> to vector<1x32xf32>
    %cst_51 = arith.constant 6.400000e+01 : f32
    %153 = vector.broadcast %cst_51 : f32 to vector<1x32xf32>
    %154 = arith.divf %152, %153 : vector<1x32xf32>
    %155 = arith.mulf %150, %150 : vector<64x32xf32>
    %cst_52 = arith.constant dense<0.000000e+00> : vector<32xf32>
    %156 = vector.multi_reduction <add>, %155, %cst_52 [0] : vector<64x32xf32> to vector<32xf32>
    %157 = vector.shape_cast %156 : vector<32xf32> to vector<1x32xf32>
    %cst_53 = arith.constant 6.400000e+01 : f32
    %158 = vector.broadcast %cst_53 : f32 to vector<1x32xf32>
    %159 = arith.divf %157, %158 : vector<1x32xf32>
    %160 = arith.mulf %154, %154 : vector<1x32xf32>
    %161 = arith.subf %159, %160 : vector<1x32xf32>
    %cst_54 = arith.constant 0.000000e+00 : f32
    %162 = vector.broadcast %cst_54 : f32 to vector<1x32xf32>
    %163 = arith.maximumf %161, %162 : vector<1x32xf32>
    %164 = vector.shape_cast %154 : vector<1x32xf32> to vector<1x1x32xf32>
    %165 = vector.broadcast %164 : vector<1x1x32xf32> to vector<4x16x32xf32>
    %166 = arith.subf %147, %165 : vector<4x16x32xf32>
    %cst_55 = arith.constant 9.99999974E-6 : f32
    %167 = vector.broadcast %cst_55 : f32 to vector<1x32xf32>
    %168 = arith.addf %163, %167 : vector<1x32xf32>
    %169 = math.rsqrt %168 : vector<1x32xf32>
    %170 = vector.shape_cast %169 : vector<1x32xf32> to vector<1x1x32xf32>
    %171 = vector.broadcast %170 : vector<1x1x32xf32> to vector<4x16x32xf32>
    %172 = arith.mulf %166, %171 : vector<4x16x32xf32>
    %173 = vector.shape_cast %148 : vector<1x32xf32> to vector<1x1x32xf32>
    %174 = vector.broadcast %173 : vector<1x1x32xf32> to vector<4x16x32xf32>
    %175 = arith.mulf %172, %174 : vector<4x16x32xf32>
    %176 = vector.shape_cast %149 : vector<1x32xf32> to vector<1x1x32xf32>
    %177 = vector.broadcast %176 : vector<1x1x32xf32> to vector<4x16x32xf32>
    %178 = arith.addf %175, %177 : vector<4x16x32xf32>
    %cst_56 = arith.constant 0.000000e+00 : f32
    %179 = vector.broadcast %cst_56 : f32 to vector<4x16x32xf32>
    %180 = arith.maximumf %178, %179 : vector<4x16x32xf32>
    %181 = vector.shape_cast %180 : vector<4x16x32xf32> to vector<64x32xf32>
    %182 = arith.truncf %181 : vector<64x32xf32> to vector<64x32xbf16>
    %c0_57 = arith.constant 0 : index
    %c0_58 = arith.constant 0 : index
    %183 = vector.load %arg16[%c0_57, %c0_58] : memref<32x4xbf16, #tpu.memory_space<vmem>>, vector<32x4xbf16>
    %cst_59 = arith.constant dense<0.000000e+00> : vector<64x4xf32>
    %184 = tpu.matmul %182, %183, %cst_59 {dimension_numbers = #tpu.dot_dimension_numbers<[1], [0], [0], [1], [0, 0, 1, 1], [], []>} : vector<64x32xbf16>, vector<32x4xbf16>, vector<64x4xf32> -> vector<64x4xf32>
    %c0_60 = arith.constant 0 : index
    %c0_61 = arith.constant 0 : index
    %185 = vector.load %arg17[%c0_60, %c0_61] : memref<1x4xf32, #tpu.memory_space<vmem>>, vector<1x4xf32>
    %186 = vector.broadcast %185 : vector<1x4xf32> to vector<64x4xf32>
    %187 = arith.addf %184, %186 : vector<64x4xf32>
    %c0_62 = arith.constant 0 : index
    %c0_63 = arith.constant 0 : index
    %188 = vector.load %arg18[%c0_62, %c0_63] : memref<1x4xf32, #tpu.memory_space<vmem>>, vector<1x4xf32>
    %c0_64 = arith.constant 0 : index
    %c0_65 = arith.constant 0 : index
    %189 = vector.load %arg19[%c0_64, %c0_65] : memref<1x4xf32, #tpu.memory_space<vmem>>, vector<1x4xf32>
    %cst_66 = arith.constant dense<0.000000e+00> : vector<4xf32>
    %190 = vector.multi_reduction <add>, %187, %cst_66 [0] : vector<64x4xf32> to vector<4xf32>
    %191 = vector.shape_cast %190 : vector<4xf32> to vector<1x4xf32>
    %cst_67 = arith.constant 6.400000e+01 : f32
    %192 = vector.broadcast %cst_67 : f32 to vector<1x4xf32>
    %193 = arith.divf %191, %192 : vector<1x4xf32>
    %194 = arith.mulf %187, %187 : vector<64x4xf32>
    %cst_68 = arith.constant dense<0.000000e+00> : vector<4xf32>
    %195 = vector.multi_reduction <add>, %194, %cst_68 [0] : vector<64x4xf32> to vector<4xf32>
    %196 = vector.shape_cast %195 : vector<4xf32> to vector<1x4xf32>
    %cst_69 = arith.constant 6.400000e+01 : f32
    %197 = vector.broadcast %cst_69 : f32 to vector<1x4xf32>
    %198 = arith.divf %196, %197 : vector<1x4xf32>
    %199 = arith.mulf %193, %193 : vector<1x4xf32>
    %200 = arith.subf %198, %199 : vector<1x4xf32>
    %cst_70 = arith.constant 0.000000e+00 : f32
    %201 = vector.broadcast %cst_70 : f32 to vector<1x4xf32>
    %202 = arith.maximumf %200, %201 : vector<1x4xf32>
    %203 = vector.broadcast %193 : vector<1x4xf32> to vector<64x4xf32>
    %204 = arith.subf %187, %203 : vector<64x4xf32>
    %cst_71 = arith.constant 9.99999974E-6 : f32
    %205 = vector.broadcast %cst_71 : f32 to vector<1x4xf32>
    %206 = arith.addf %202, %205 : vector<1x4xf32>
    %207 = math.rsqrt %206 : vector<1x4xf32>
    %208 = vector.broadcast %207 : vector<1x4xf32> to vector<64x4xf32>
    %209 = arith.mulf %204, %208 : vector<64x4xf32>
    %210 = vector.broadcast %188 : vector<1x4xf32> to vector<64x4xf32>
    %211 = arith.mulf %209, %210 : vector<64x4xf32>
    %212 = vector.broadcast %189 : vector<1x4xf32> to vector<64x4xf32>
    %213 = arith.addf %211, %212 : vector<64x4xf32>
    %cst_72 = arith.constant 0.000000e+00 : f32
    %214 = vector.broadcast %cst_72 : f32 to vector<64x4xf32>
    %215 = arith.maximumf %213, %214 : vector<64x4xf32>
    %216 = arith.truncf %215 : vector<64x4xf32> to vector<64x4xbf16>
    %c0_73 = arith.constant 0 : index
    %c0_74 = arith.constant 0 : index
    %217 = vector.load %arg20[%c0_73, %c0_74] : memref<4x32xbf16, #tpu.memory_space<vmem>>, vector<4x32xbf16>
    %cst_75 = arith.constant dense<0.000000e+00> : vector<64x32xf32>
    %218 = tpu.matmul %216, %217, %cst_75 {dimension_numbers = #tpu.dot_dimension_numbers<[1], [0], [0], [1], [0, 0, 1, 1], [], []>} : vector<64x4xbf16>, vector<4x32xbf16>, vector<64x32xf32> -> vector<64x32xf32>
    %c0_76 = arith.constant 0 : index
    %c0_77 = arith.constant 0 : index
    %219 = vector.load %arg21[%c0_76, %c0_77] : memref<1x32xf32, #tpu.memory_space<vmem>>, vector<1x32xf32>
    %220 = vector.broadcast %219 : vector<1x32xf32> to vector<64x32xf32>
    %221 = arith.addf %218, %220 : vector<64x32xf32>
    %222 = vector.shape_cast %221 : vector<64x32xf32> to vector<4x16x32xf32>
    %223 = vector.extract_strided_slice %222 {offsets = [0, 0, 0], sizes = [1, 16, 32], strides = [1, 1, 1]} : vector<4x16x32xf32> to vector<1x16x32xf32>
    %224 = vector.shape_cast %223 : vector<1x16x32xf32> to vector<16x32xf32>
    %225 = vector.extract_strided_slice %222 {offsets = [1, 0, 0], sizes = [1, 16, 32], strides = [1, 1, 1]} : vector<4x16x32xf32> to vector<1x16x32xf32>
    %226 = vector.shape_cast %225 : vector<1x16x32xf32> to vector<16x32xf32>
    %227 = arith.maximumf %224, %226 : vector<16x32xf32>
    %228 = vector.extract_strided_slice %222 {offsets = [2, 0, 0], sizes = [1, 16, 32], strides = [1, 1, 1]} : vector<4x16x32xf32> to vector<1x16x32xf32>
    %229 = vector.shape_cast %228 : vector<1x16x32xf32> to vector<16x32xf32>
    %230 = arith.maximumf %227, %229 : vector<16x32xf32>
    %231 = vector.extract_strided_slice %222 {offsets = [3, 0, 0], sizes = [1, 16, 32], strides = [1, 1, 1]} : vector<4x16x32xf32> to vector<1x16x32xf32>
    %232 = vector.shape_cast %231 : vector<1x16x32xf32> to vector<16x32xf32>
    %233 = arith.maximumf %230, %232 : vector<16x32xf32>
    %234 = vector.shape_cast %233 : vector<16x32xf32> to vector<1x16x32xf32>
    %235 = vector.broadcast %234 : vector<1x16x32xf32> to vector<4x16x32xf32>
    %236 = arith.subf %222, %235 : vector<4x16x32xf32>
    %237 = math.exp %236 : vector<4x16x32xf32>
    %238 = vector.extract_strided_slice %237 {offsets = [0, 0, 0], sizes = [1, 16, 32], strides = [1, 1, 1]} : vector<4x16x32xf32> to vector<1x16x32xf32>
    %239 = vector.shape_cast %238 : vector<1x16x32xf32> to vector<16x32xf32>
    %240 = vector.extract_strided_slice %237 {offsets = [1, 0, 0], sizes = [1, 16, 32], strides = [1, 1, 1]} : vector<4x16x32xf32> to vector<1x16x32xf32>
    %241 = vector.shape_cast %240 : vector<1x16x32xf32> to vector<16x32xf32>
    %242 = arith.addf %239, %241 : vector<16x32xf32>
    %243 = vector.extract_strided_slice %237 {offsets = [2, 0, 0], sizes = [1, 16, 32], strides = [1, 1, 1]} : vector<4x16x32xf32> to vector<1x16x32xf32>
    %244 = vector.shape_cast %243 : vector<1x16x32xf32> to vector<16x32xf32>
    %245 = arith.addf %242, %244 : vector<16x32xf32>
    %246 = vector.extract_strided_slice %237 {offsets = [3, 0, 0], sizes = [1, 16, 32], strides = [1, 1, 1]} : vector<4x16x32xf32> to vector<1x16x32xf32>
    %247 = vector.shape_cast %246 : vector<1x16x32xf32> to vector<16x32xf32>
    %248 = arith.addf %245, %247 : vector<16x32xf32>
    %cst_78 = arith.constant 1.000000e-16 : f32
    %249 = vector.broadcast %cst_78 : f32 to vector<16x32xf32>
    %250 = arith.addf %248, %249 : vector<16x32xf32>
    %251 = tpu.reciprocal %250 {approx = true} : vector<16x32xf32> -> vector<16x32xf32>
    %252 = vector.shape_cast %251 : vector<16x32xf32> to vector<1x16x32xf32>
    %253 = vector.broadcast %252 : vector<1x16x32xf32> to vector<4x16x32xf32>
    %254 = arith.mulf %237, %253 : vector<4x16x32xf32>
    %255 = arith.addf %54, %143 : vector<4x16x32xf32>
    %256 = arith.mulf %255, %254 : vector<4x16x32xf32>
    %257 = vector.extract_strided_slice %256 {offsets = [0, 0, 0], sizes = [1, 16, 32], strides = [1, 1, 1]} : vector<4x16x32xf32> to vector<1x16x32xf32>
    %258 = vector.shape_cast %257 : vector<1x16x32xf32> to vector<16x32xf32>
    %259 = vector.extract_strided_slice %256 {offsets = [1, 0, 0], sizes = [1, 16, 32], strides = [1, 1, 1]} : vector<4x16x32xf32> to vector<1x16x32xf32>
    %260 = vector.shape_cast %259 : vector<1x16x32xf32> to vector<16x32xf32>
    %261 = arith.addf %258, %260 : vector<16x32xf32>
    %262 = vector.extract_strided_slice %256 {offsets = [2, 0, 0], sizes = [1, 16, 32], strides = [1, 1, 1]} : vector<4x16x32xf32> to vector<1x16x32xf32>
    %263 = vector.shape_cast %262 : vector<1x16x32xf32> to vector<16x32xf32>
    %264 = arith.addf %261, %263 : vector<16x32xf32>
    %265 = vector.extract_strided_slice %256 {offsets = [3, 0, 0], sizes = [1, 16, 32], strides = [1, 1, 1]} : vector<4x16x32xf32> to vector<1x16x32xf32>
    %266 = vector.shape_cast %265 : vector<1x16x32xf32> to vector<16x32xf32>
    %267 = arith.addf %264, %266 : vector<16x32xf32>
    %c0_79 = arith.constant 0 : index
    %c0_80 = arith.constant 0 : index
    %268 = vector.load %arg23[%c0_79, %c0_80] : memref<1x32xf32, #tpu.memory_space<vmem>>, vector<1x32xf32>
    %c0_81 = arith.constant 0 : index
    %c0_82 = arith.constant 0 : index
    %269 = vector.load %arg24[%c0_81, %c0_82] : memref<1x32xf32, #tpu.memory_space<vmem>>, vector<1x32xf32>
    %cst_83 = arith.constant dense<0.000000e+00> : vector<32xf32>
    %270 = vector.multi_reduction <add>, %267, %cst_83 [0] : vector<16x32xf32> to vector<32xf32>
    %271 = vector.shape_cast %270 : vector<32xf32> to vector<1x32xf32>
    %cst_84 = arith.constant 1.600000e+01 : f32
    %272 = vector.broadcast %cst_84 : f32 to vector<1x32xf32>
    %273 = arith.divf %271, %272 : vector<1x32xf32>
    %274 = arith.mulf %267, %267 : vector<16x32xf32>
    %cst_85 = arith.constant dense<0.000000e+00> : vector<32xf32>
    %275 = vector.multi_reduction <add>, %274, %cst_85 [0] : vector<16x32xf32> to vector<32xf32>
    %276 = vector.shape_cast %275 : vector<32xf32> to vector<1x32xf32>
    %cst_86 = arith.constant 1.600000e+01 : f32
    %277 = vector.broadcast %cst_86 : f32 to vector<1x32xf32>
    %278 = arith.divf %276, %277 : vector<1x32xf32>
    %279 = arith.mulf %273, %273 : vector<1x32xf32>
    %280 = arith.subf %278, %279 : vector<1x32xf32>
    %cst_87 = arith.constant 0.000000e+00 : f32
    %281 = vector.broadcast %cst_87 : f32 to vector<1x32xf32>
    %282 = arith.maximumf %280, %281 : vector<1x32xf32>
    %283 = vector.broadcast %273 : vector<1x32xf32> to vector<16x32xf32>
    %284 = arith.subf %267, %283 : vector<16x32xf32>
    %cst_88 = arith.constant 9.99999974E-6 : f32
    %285 = vector.broadcast %cst_88 : f32 to vector<1x32xf32>
    %286 = arith.addf %282, %285 : vector<1x32xf32>
    %287 = math.rsqrt %286 : vector<1x32xf32>
    %288 = vector.broadcast %287 : vector<1x32xf32> to vector<16x32xf32>
    %289 = arith.mulf %284, %288 : vector<16x32xf32>
    %290 = vector.broadcast %268 : vector<1x32xf32> to vector<16x32xf32>
    %291 = arith.mulf %289, %290 : vector<16x32xf32>
    %292 = vector.broadcast %269 : vector<1x32xf32> to vector<16x32xf32>
    %293 = arith.addf %291, %292 : vector<16x32xf32>
    %cst_89 = arith.constant 0.000000e+00 : f32
    %294 = vector.broadcast %cst_89 : f32 to vector<16x32xf32>
    %295 = arith.maximumf %293, %294 : vector<16x32xf32>
    %296 = arith.truncf %295 : vector<16x32xf32> to vector<16x32xbf16>
    %c0_90 = arith.constant 0 : index
    %c0_91 = arith.constant 0 : index
    %297 = vector.load %arg22[%c0_90, %c0_91] : memref<32x32xbf16, #tpu.memory_space<vmem>>, vector<32x32xbf16>
    %cst_92 = arith.constant dense<0.000000e+00> : vector<16x32xf32>
    %298 = tpu.matmul %296, %297, %cst_92 {dimension_numbers = #tpu.dot_dimension_numbers<[1], [0], [0], [1], [0, 0, 1, 1], [], []>} : vector<16x32xbf16>, vector<32x32xbf16>, vector<16x32xf32> -> vector<16x32xf32>
    %c0_93 = arith.constant 0 : index
    %c0_94 = arith.constant 0 : index
    %299 = vector.load %arg25[%c0_93, %c0_94] : memref<1x32xf32, #tpu.memory_space<vmem>>, vector<1x32xf32>
    %c0_95 = arith.constant 0 : index
    %c0_96 = arith.constant 0 : index
    %300 = vector.load %arg26[%c0_95, %c0_96] : memref<1x32xf32, #tpu.memory_space<vmem>>, vector<1x32xf32>
    %cst_97 = arith.constant dense<0.000000e+00> : vector<32xf32>
    %301 = vector.multi_reduction <add>, %298, %cst_97 [0] : vector<16x32xf32> to vector<32xf32>
    %302 = vector.shape_cast %301 : vector<32xf32> to vector<1x32xf32>
    %cst_98 = arith.constant 1.600000e+01 : f32
    %303 = vector.broadcast %cst_98 : f32 to vector<1x32xf32>
    %304 = arith.divf %302, %303 : vector<1x32xf32>
    %305 = arith.mulf %298, %298 : vector<16x32xf32>
    %cst_99 = arith.constant dense<0.000000e+00> : vector<32xf32>
    %306 = vector.multi_reduction <add>, %305, %cst_99 [0] : vector<16x32xf32> to vector<32xf32>
    %307 = vector.shape_cast %306 : vector<32xf32> to vector<1x32xf32>
    %cst_100 = arith.constant 1.600000e+01 : f32
    %308 = vector.broadcast %cst_100 : f32 to vector<1x32xf32>
    %309 = arith.divf %307, %308 : vector<1x32xf32>
    %310 = arith.mulf %304, %304 : vector<1x32xf32>
    %311 = arith.subf %309, %310 : vector<1x32xf32>
    %cst_101 = arith.constant 0.000000e+00 : f32
    %312 = vector.broadcast %cst_101 : f32 to vector<1x32xf32>
    %313 = arith.maximumf %311, %312 : vector<1x32xf32>
    %314 = vector.broadcast %304 : vector<1x32xf32> to vector<16x32xf32>
    %315 = arith.subf %298, %314 : vector<16x32xf32>
    %cst_102 = arith.constant 9.99999974E-6 : f32
    %316 = vector.broadcast %cst_102 : f32 to vector<1x32xf32>
    %317 = arith.addf %313, %316 : vector<1x32xf32>
    %318 = math.rsqrt %317 : vector<1x32xf32>
    %319 = vector.broadcast %318 : vector<1x32xf32> to vector<16x32xf32>
    %320 = arith.mulf %315, %319 : vector<16x32xf32>
    %321 = vector.broadcast %299 : vector<1x32xf32> to vector<16x32xf32>
    %322 = arith.mulf %320, %321 : vector<16x32xf32>
    %323 = vector.broadcast %300 : vector<1x32xf32> to vector<16x32xf32>
    %324 = arith.addf %322, %323 : vector<16x32xf32>
    %325 = arith.addf %324, %0 : vector<16x32xf32>
    %cst_103 = arith.constant 0.000000e+00 : f32
    %326 = vector.broadcast %cst_103 : f32 to vector<16x32xf32>
    %327 = arith.maximumf %325, %326 : vector<16x32xf32>
    %c0_104 = arith.constant 0 : index
    %c0_105 = arith.constant 0 : index
    %328 = vector.load %arg27[%c0_104, %c0_105] : memref<16x32xf32, #tpu.memory_space<vmem>>, vector<16x32xf32>
    tpu.vector_store %arg27[%c0_104, %c0_105], %327 {strides = array<i32>} : memref<16x32xf32, #tpu.memory_space<vmem>>, vector<16x32xf32>,
    return
  }
}

</mosaic_0001>

<llo_original>
// kernel: _transformer_block_impl.1
$region0: #{_transformer_block_impl.1}
  #allocation0 [shape = 'u32[]', space=smem, size = 0x4, offset = 0x4, fixed_abs, tag = 'smem constant byte address 0x4 - core index']
  #allocation1 [shape = 'u32[144,128]{1,0:T(1,128)}', space=vmem, size = 0x12000, scoped, tag = 'internal scratch']
  %s0 = inlined_call_operand.vmem [shape: f32[16,32], index: 0, kind: input, shape index: {}]
  %s1 = inlined_call_operand.vmem [shape: f32[16,3], index: 1, kind: input, shape index: {}]
  %s2 = inlined_call_operand.vmem [shape: s32[64,1], index: 2, kind: input, shape index: {}]
  %s3 = inlined_call_operand.vmem [shape: bf16[32,32], index: 3, kind: input, shape index: {}]
  %s4 = inlined_call_operand.vmem [shape: f32[1,32], index: 4, kind: input, shape index: {}]
  %s5 = inlined_call_operand.vmem [shape: f32[1,32], index: 5, kind: input, shape index: {}]
  %s6 = inlined_call_operand.vmem [shape: bf16[32,96], index: 6, kind: input, shape index: {}]
  %s7 = inlined_call_operand.vmem [shape: f32[1,96], index: 7, kind: input, shape index: {}]
  %s8 = inlined_call_operand.vmem [shape: f32[3,3], index: 8, kind: input, shape index: {}]
  %s9 = inlined_call_operand.vmem [shape: f32[1,3], index: 9, kind: input, shape index: {}]
  %s10 = inlined_call_operand.vmem [shape: f32[1,3], index: 10, kind: input, shape index: {}]
  %s11 = inlined_call_operand.vmem [shape: f32[1,3], index: 11, kind: input, shape index: {}]
  %s12 = inlined_call_operand.vmem [shape: f32[3,32], index: 12, kind: input, shape index: {}]
  %s13 = inlined_call_operand.vmem [shape: f32[1,32], index: 13, kind: input, shape index: {}]
  %s14 = inlined_call_operand.vmem [shape: f32[1,32], index: 14, kind: input, shape index: {}]
  %s15 = inlined_call_operand.vmem [shape: f32[1,32], index: 15, kind: input, shape index: {}]
  %s16 = inlined_call_operand.vmem [shape: bf16[32,4], index: 16, kind: input, shape index: {}]
  %s17 = inlined_call_operand.vmem [shape: f32[1,4], index: 17, kind: input, shape index: {}]
  %s18 = inlined_call_operand.vmem [shape: f32[1,4], index: 18, kind: input, shape index: {}]
  %s19 = inlined_call_operand.vmem [shape: f32[1,4], index: 19, kind: input, shape index: {}]
  %s20 = inlined_call_operand.vmem [shape: bf16[4,32], index: 20, kind: input, shape index: {}]
  %s21 = inlined_call_operand.vmem [shape: f32[1,32], index: 21, kind: input, shape index: {}]
  %s22 = inlined_call_operand.vmem [shape: bf16[32,32], index: 22, kind: input, shape index: {}]
  %s23 = inlined_call_operand.vmem [shape: f32[1,32], index: 23, kind: input, shape index: {}]
  %s24 = inlined_call_operand.vmem [shape: f32[1,32], index: 24, kind: input, shape index: {}]
  %s25 = inlined_call_operand.vmem [shape: f32[1,32], index: 25, kind: input, shape index: {}]
  %s26 = inlined_call_operand.vmem [shape: f32[1,32], index: 26, kind: input, shape index: {}]
  %s27 = inlined_call_operand.hbm [shape: f32[16,32], index: 27, kind: output, shape index: {}]
  %s28 = sld [smem:[#allocation0]]
  $region118: #{_transformer_block_impl.1} parent=0
    _
  %s30 = ssub.s32 1, %s28
  %s31 = scalar_select 0, %s30, %s28
  $region1: #{_transformer_block_impl.1} parent=0
    #allocation2 [shape = 'u8[8192]{0}', space=vmem, size = 0x2000, scoped, tag = 'output window, operand 0, single buffered']
    #allocation3 [shape = 's32[1]{0}', space=sflag, size = 0x4, scoped, tag = 'scoped memory for _transformer_block_impl.1']
    %32 = vsyncpa [#allocation3], 0
    // Predicated region
    $region2: #{_transformer_block_impl.1} parent=1 // pred_check
      _
    $region3: #{_transformer_block_impl.1} parent=1 // pred_check_branch
      %34 = sbr.rel (0) target = $region5
    $region4: #{_transformer_block_impl.1} parent=1 // pred_region
      _
    $region5: #{_transformer_block_impl.1} parent=1 // pred_fallthru
      _
    // Predicated region
    $region6: #{_transformer_block_impl.1} parent=1 // pred_check
      _
    $region7: #{_transformer_block_impl.1} parent=1 // pred_check_branch
      %36 = sbr.rel (0) target = $region9
    $region8: #{_transformer_block_impl.1} parent=1 // pred_region
      _
    $region9: #{_transformer_block_impl.1} parent=1 // pred_fallthru
      _
    // Predicated region
    $region10: #{_transformer_block_impl.1} parent=1 // pred_check
      _
    $region11: #{_transformer_block_impl.1} parent=1 // pred_check_branch
      %38 = sbr.rel (0) target = $region13
    $region12: #{_transformer_block_impl.1} parent=1 // pred_region
      _
    $region13: #{_transformer_block_impl.1} parent=1 // pred_fallthru
      _
    // Predicated region
    $region14: #{_transformer_block_impl.1} parent=1 // pred_check
      _
    $region15: #{_transformer_block_impl.1} parent=1 // pred_check_branch
      %40 = sbr.rel (0) target = $region17
    $region16: #{_transformer_block_impl.1} parent=1 // pred_region
      _
    $region17: #{_transformer_block_impl.1} parent=1 // pred_fallthru
      _
    // Predicated region
    $region18: #{_transformer_block_impl.1} parent=1 // pred_check
      _
    $region19: #{_transformer_block_impl.1} parent=1 // pred_check_branch
      %42 = sbr.rel (0) target = $region21
    $region20: #{_transformer_block_impl.1} parent=1 // pred_region
      _
    $region21: #{_transformer_block_impl.1} parent=1 // pred_fallthru
      _
    // Predicated region
    $region22: #{_transformer_block_impl.1} parent=1 // pred_check
      _
    $region23: #{_transformer_block_impl.1} parent=1 // pred_check_branch
      %44 = sbr.rel (0) target = $region25
    $region24: #{_transformer_block_impl.1} parent=1 // pred_region
      _
    $region25: #{_transformer_block_impl.1} parent=1 // pred_fallthru
      _
    // Predicated region
    $region26: #{_transformer_block_impl.1} parent=1 // pred_check
      _
    $region27: #{_transformer_block_impl.1} parent=1 // pred_check_branch
      %46 = sbr.rel (0) target = $region29
    $region28: #{_transformer_block_impl.1} parent=1 // pred_region
      _
    $region29: #{_transformer_block_impl.1} parent=1 // pred_fallthru
      _
    // Predicated region
    $region30: #{_transformer_block_impl.1} parent=1 // pred_check
      _
    $region31: #{_transformer_block_impl.1} parent=1 // pred_check_branch
      %48 = sbr.rel (0) target = $region33
    $region32: #{_transformer_block_impl.1} parent=1 // pred_region
      _
    $region33: #{_transformer_block_impl.1} parent=1 // pred_fallthru
      _
    // Predicated region
    $region34: #{_transformer_block_impl.1} parent=1 // pred_check
      _
    $region35: #{_transformer_block_impl.1} parent=1 // pred_check_branch
      %50 = sbr.rel (0) target = $region37
    $region36: #{_transformer_block_impl.1} parent=1 // pred_region
      _
    $region37: #{_transformer_block_impl.1} parent=1 // pred_fallthru
      _
    // Predicated region
    $region38: #{_transformer_block_impl.1} parent=1 // pred_check
      _
    $region39: #{_transformer_block_impl.1} parent=1 // pred_check_branch
      %52 = sbr.rel (0) target = $region41
    $region40: #{_transformer_block_impl.1} parent=1 // pred_region
      _
    $region41: #{_transformer_block_impl.1} parent=1 // pred_fallthru
      _
    // Predicated region
    $region42: #{_transformer_block_impl.1} parent=1 // pred_check
      _
    $region43: #{_transformer_block_impl.1} parent=1 // pred_check_branch
      %54 = sbr.rel (0) target = $region45
    $region44: #{_transformer_block_impl.1} parent=1 // pred_region
      _
    $region45: #{_transformer_block_impl.1} parent=1 // pred_fallthru
      _
    // Predicated region
    $region46: #{_transformer_block_impl.1} parent=1 // pred_check
      _
    $region47: #{_transformer_block_impl.1} parent=1 // pred_check_branch
      %56 = sbr.rel (0) target = $region49
    $region48: #{_transformer_block_impl.1} parent=1 // pred_region
      _
    $region49: #{_transformer_block_impl.1} parent=1 // pred_fallthru
      _
    // Predicated region
    $region50: #{_transformer_block_impl.1} parent=1 // pred_check
      _
    $region51: #{_transformer_block_impl.1} parent=1 // pred_check_branch
      %58 = sbr.rel (0) target = $region53
    $region52: #{_transformer_block_impl.1} parent=1 // pred_region
      _
    $region53: #{_transformer_block_impl.1} parent=1 // pred_fallthru
      _
    // Predicated region
    $region54: #{_transformer_block_impl.1} parent=1 // pred_check
      _
    $region55: #{_transformer_block_impl.1} parent=1 // pred_check_branch
      %60 = sbr.rel (0) target = $region57
    $region56: #{_transformer_block_impl.1} parent=1 // pred_region
      _
    $region57: #{_transformer_block_impl.1} parent=1 // pred_fallthru
      _
    // Predicated region
    $region58: #{_transformer_block_impl.1} parent=1 // pred_check
      _
    $region59: #{_transformer_block_impl.1} parent=1 // pred_check_branch
      %62 = sbr.rel (0) target = $region61
    $region60: #{_transformer_block_impl.1} parent=1 // pred_region
      _
    $region61: #{_transformer_block_impl.1} parent=1 // pred_fallthru
      _
    // Predicated region
    $region62: #{_transformer_block_impl.1} parent=1 // pred_check
      _
    $region63: #{_transformer_block_impl.1} parent=1 // pred_check_branch
      %64 = sbr.rel (0) target = $region65
    $region64: #{_transformer_block_impl.1} parent=1 // pred_region
      _
    $region65: #{_transformer_block_impl.1} parent=1 // pred_fallthru
      _
    // Predicated region
    $region66: #{_transformer_block_impl.1} parent=1 // pred_check
      _
    $region67: #{_transformer_block_impl.1} parent=1 // pred_check_branch
      %66 = sbr.rel (0) target = $region69
    $region68: #{_transformer_block_impl.1} parent=1 // pred_region
      _
    $region69: #{_transformer_block_impl.1} parent=1 // pred_fallthru
      _
    // Predicated region
    $region70: #{_transformer_block_impl.1} parent=1 // pred_check
      _
    $region71: #{_transformer_block_impl.1} parent=1 // pred_check_branch
      %68 = sbr.rel (0) target = $region73
    $region72: #{_transformer_block_impl.1} parent=1 // pred_region
      _
    $region73: #{_transformer_block_impl.1} parent=1 // pred_fallthru
      _
    // Predicated region
    $region74: #{_transformer_block_impl.1} parent=1 // pred_check
      _
    $region75: #{_transformer_block_impl.1} parent=1 // pred_check_branch
      %70 = sbr.rel (0) target = $region77
    $region76: #{_transformer_block_impl.1} parent=1 // pred_region
      _
    $region77: #{_transformer_block_impl.1} parent=1 // pred_fallthru
      _
    // Predicated region
    $region78: #{_transformer_block_impl.1} parent=1 // pred_check
      _
    $region79: #{_transformer_block_impl.1} parent=1 // pred_check_branch
      %72 = sbr.rel (0) target = $region81
    $region80: #{_transformer_block_impl.1} parent=1 // pred_region
      _
    $region81: #{_transformer_block_impl.1} parent=1 // pred_fallthru
      _
    // Predicated region
    $region82: #{_transformer_block_impl.1} parent=1 // pred_check
      _
    $region83: #{_transformer_block_impl.1} parent=1 // pred_check_branch
      %74 = sbr.rel (0) target = $region85
    $region84: #{_transformer_block_impl.1} parent=1 // pred_region
      _
    $region85: #{_transformer_block_impl.1} parent=1 // pred_fallthru
      _
    // Predicated region
    $region86: #{_transformer_block_impl.1} parent=1 // pred_check
      _
    $region87: #{_transformer_block_impl.1} parent=1 // pred_check_branch
      %76 = sbr.rel (0) target = $region89
    $region88: #{_transformer_block_impl.1} parent=1 // pred_region
      _
    $region89: #{_transformer_block_impl.1} parent=1 // pred_fallthru
      _
    // Predicated region
    $region90: #{_transformer_block_impl.1} parent=1 // pred_check
      _
    $region91: #{_transformer_block_impl.1} parent=1 // pred_check_branch
      %78 = sbr.rel (0) target = $region93
    $region92: #{_transformer_block_impl.1} parent=1 // pred_region
      _
    $region93: #{_transformer_block_impl.1} parent=1 // pred_fallthru
      _
    // Predicated region
    $region94: #{_transformer_block_impl.1} parent=1 // pred_check
      _
    $region95: #{_transformer_block_impl.1} parent=1 // pred_check_branch
      %80 = sbr.rel (0) target = $region97
    $region96: #{_transformer_block_impl.1} parent=1 // pred_region
      _
    $region97: #{_transformer_block_impl.1} parent=1 // pred_fallthru
      _
    // Predicated region
    $region98: #{_transformer_block_impl.1} parent=1 // pred_check
      _
    $region99: #{_transformer_block_impl.1} parent=1 // pred_check_branch
      %82 = sbr.rel (0) target = $region101
    $region100: #{_transformer_block_impl.1} parent=1 // pred_region
      _
    $region101: #{_transformer_block_impl.1} parent=1 // pred_fallthru
      _
    // Predicated region
    $region102: #{_transformer_block_impl.1} parent=1 // pred_check
      _
    $region103: #{_transformer_block_impl.1} parent=1 // pred_check_branch
      %84 = sbr.rel (0) target = $region105
    $region104: #{_transformer_block_impl.1} parent=1 // pred_region
      _
    $region105: #{_transformer_block_impl.1} parent=1 // pred_fallthru
      _
    // Predicated region
    $region106: #{_transformer_block_impl.1} parent=1 // pred_check
      _
    $region107: #{_transformer_block_impl.1} parent=1 // pred_check_branch
      %86 = sbr.rel (0) target = $region109
    $region108: #{_transformer_block_impl.1} parent=1 // pred_region
      _
    $region109: #{_transformer_block_impl.1} parent=1 // pred_fallthru
      _
    %v88 = vld [vmem:[%s0] sm:$0xff]
    %v89 = vld [vmem:[%s0 + $0x8] sm:$0xff]
    %v90 = vld [vmem:[%s1] sm:$0xff]
    %v91 = vld [vmem:[%s1 + $0x8] sm:$0xff]
    %v92 = vld [vmem:[%s2] sm:$0xff]
    %v93 = vld [vmem:[%s2 + $0x8] sm:$0xff]
    %v94 = vld [vmem:[%s2 + $0x10] sm:$0xff]
    %v95 = vld [vmem:[%s2 + $0x18] sm:$0xff]
    %v96 = vld [vmem:[%s2 + $0x20] sm:$0xff]
    %v97 = vld [vmem:[%s2 + $0x28] sm:$0xff]
    %v98 = vld [vmem:[%s2 + $0x30] sm:$0xff]
    %v99 = vld [vmem:[%s2 + $0x38] sm:$0xff]
    %v100 = vpack.c.bf16 %v89, %v88
    %v101 = vld [vmem:[%s3] sm:$0xf]
    %v102 = vld [vmem:[%s3 + $0x4] sm:$0xf]
    %v103 = vld [vmem:[%s3 + $0x8] sm:$0xf]
    %v104 = vld [vmem:[%s3 + $0xc] sm:$0xf]
    %v109 = vunpack.c.l.b16 %v101
    %v110 = vunpack.c.l.b16 %v102
    %v111 = vunpack.c.l.b16 %v103
    %v112 = vunpack.c.l.b16 %v104
    %v113 = vpack.c.b16 %v110, %v109
    %v114 = vpack.c.b16 %v112, %v111
    %vm117 = vcmask 261120
    %v119 = vsel %vm117, %v100, 0
    %121 = vmatprep.subr.bf16.mxu0 0
    %122 = vmatpush1.bf16.msra.mxu0 0
    %123 = vmatprep.subr.bf16.mxu0 0
    %124 = vmatpush1.bf16.msra.mxu0 0
    %125 = vmatprep.subr.bf16.mxu0 0
    %126 = vmatpush1.bf16.msra.mxu0 0
    %127 = vmatprep.subr.bf16.mxu0 0
    %128 = vmatpush1.bf16.msra.mxu0 0
    %129 = vmatprep.subr.bf16.mxu0 0
    %130 = vmatpush1.bf16.msra.mxu0 0
    %131 = vmatprep.subr.bf16.mxu0 0
    %132 = vmatpush1.bf16.msra.mxu0 0
    %133 = vmatprep.subr.bf16.mxu0 0
    %134 = vmatpush1.bf16.msra.mxu0 %v114
    %135 = vmatprep.subr.bf16.mxu0 0
    %136 = vmatpush1.bf16.msra.mxu0 %v113
    %137 = vmatprep.subr.bf16.mxu0 0
    %138 = vmatpush2.bf16.msra.mxu0 0
    %139 = vmatprep.subr.bf16.mxu0 0
    %140 = vmatpush2.bf16.msra.mxu0 0
    %141 = vmatprep.subr.bf16.mxu0 0
    %142 = vmatpush2.bf16.msra.mxu0 0
    %143 = vmatprep.subr.bf16.mxu0 0
    %144 = vmatpush2.bf16.msra.mxu0 0
    %145 = vmatprep.subr.bf16.mxu0 0
    %146 = vmatpush2.bf16.msra.mxu0 0
    %147 = vmatprep.subr.bf16.mxu0 0
    %148 = vmatpush2.bf16.msra.mxu0 0
    %149 = vmatprep.subr.bf16.mxu0 0
    %150 = vmatpush2.bf16.msra.mxu0 0
    %151 = vmatprep.subr.bf16.mxu0 0
    %152 = vmatpush2.bf16.msra.mxu0 0
    %153 = vmatprep.mubr.bf16.mxu0 0
    %154 = vmatmul.mubr.bf16.gmra.mxu0 %v119
    %v155 = vpop.f32.mrf.mxu0
    %v156 = vadd.f32 0.0, %v155
    %v157 = vpop.f32.mrf.mxu0
    %v158 = vpop.f32.mrf.mxu0
    %v159 = vadd.f32 0.0, %v158
    %v160 = vpop.f32.mrf.mxu0
    %161 = vdwg.mxu0
    %v162 = vld [vmem:[%s4] sm:$0x1]
    %v163 = vld [vmem:[%s5] sm:$0x1]
    %v164 = vsel %vm117, %v156, 0.0
    %v165 = vsel %vm117, %v159, 0.0
    %v166 = vadd.f32 %v164, %v165
    %v167 = vrot.slane %v166, 4
    %v168 = vadd.f32 %v166, %v167
    %v169 = vrot.slane %v168, 2
    %v170 = vadd.f32 %v168, %v169
    %v171 = vrot.slane %v170, 1
    %v172 = vadd.f32 %v170, %v171
    %v173 = vrcp.pop 16.0
    %v174 = vmul.f32 %v172, %v173
    %v175 = vmul.f32 %v156, %v156
    %v176 = vmul.f32 %v159, %v159
    %v177 = vsel %vm117, %v175, 0.0
    %v178 = vsel %vm117, %v176, 0.0
    %v179 = vadd.f32 %v177, %v178
    %v180 = vrot.slane %v179, 4
    %v181 = vadd.f32 %v179, %v180
    %v182 = vrot.slane %v181, 2
    %v183 = vadd.f32 %v181, %v182
    %v184 = vrot.slane %v183, 1
    %v185 = vadd.f32 %v183, %v184
    %v186 = vmul.f32 %v185, %v173
    %v187 = vmul.f32 %v174, %v174
    %v188 = vsub.f32 %v186, %v187
    %v189 = vmax.f32 %v188, 0.0
    %v190 = vsub.f32 %v156, %v174
    %v191 = vsub.f32 %v159, %v174
    %v192 = vadd.f32 %v189, 1e-05
    %v193 = vrsqrt.pop %v192
    %v194 = vmul.f32 %v190, %v193
    %v195 = vmul.f32 %v191, %v193
    %v197 = vlaneseq
    %v198 = vshrl.u32 %v197, 7
    %v199 = vsub.s32 0, %v198
    %v200 = vrot.slane %v162, %v199
    %v202 = vmul.f32 %v194, %v200
    %v203 = vmul.f32 %v195, %v200
    %v205 = vlaneseq
    %v206 = vshrl.u32 %v205, 7
    %v207 = vsub.s32 0, %v206
    %v208 = vrot.slane %v163, %v207
    %v210 = vadd.f32 %v202, %v208
    %v211 = vadd.f32 %v203, %v208
    %v212 = vmax.f32 %v210, 0.0
    %v213 = vmax.f32 %v211, 0.0
    %v214 = vpack.c.bf16 %v213, %v212
    %v215 = vld [vmem:[%s6] sm:$0xf]
    %v216 = vld [vmem:[%s6 + $0x4] sm:$0xf]
    %v217 = vld [vmem:[%s6 + $0x8] sm:$0xf]
    %v218 = vld [vmem:[%s6 + $0xc] sm:$0xf]
    %v219 = vld [vmem:[%s7] sm:$0x1]
    %v221 = vlaneseq
    %v222 = vshrl.u32 %v221, 7
    %v223 = vsub.s32 0, %v222
    %v224 = vrot.slane %v219, %v223
    %v230 = vunpack.c.l.b16 %v215
    %v231 = vunpack.c.l.b16 %v216
    %v232 = vunpack.c.l.b16 %v217
    %v233 = vunpack.c.l.b16 %v218
    %v234 = vpack.c.b16 %v231, %v230
    %v235 = vpack.c.b16 %v233, %v232
    %v239 = vsel %vm117, %v214, 0
    %241 = vmatprep.subr.bf16.mxu0 0
    %242 = vmatpush1.bf16.msra.mxu0 0
    %243 = vmatprep.subr.bf16.mxu0 0
    %244 = vmatpush1.bf16.msra.mxu0 0
    %245 = vmatprep.subr.bf16.mxu0 0
    %246 = vmatpush1.bf16.msra.mxu0 0
    %247 = vmatprep.subr.bf16.mxu0 0
    %248 = vmatpush1.bf16.msra.mxu0 0
    %249 = vmatprep.subr.bf16.mxu0 0
    %250 = vmatpush1.bf16.msra.mxu0 0
    %251 = vmatprep.subr.bf16.mxu0 0
    %252 = vmatpush1.bf16.msra.mxu0 0
    %253 = vmatprep.subr.bf16.mxu0 0
    %254 = vmatpush1.bf16.msra.mxu0 %v235
    %255 = vmatprep.subr.bf16.mxu0 0
    %256 = vmatpush1.bf16.msra.mxu0 %v234
    %257 = vmatprep.subr.bf16.mxu0 0
    %258 = vmatpush2.bf16.msra.mxu0 0
    %259 = vmatprep.subr.bf16.mxu0 0
    %260 = vmatpush2.bf16.msra.mxu0 0
    %261 = vmatprep.subr.bf16.mxu0 0
    %262 = vmatpush2.bf16.msra.mxu0 0
    %263 = vmatprep.subr.bf16.mxu0 0
    %264 = vmatpush2.bf16.msra.mxu0 0
    %265 = vmatprep.subr.bf16.mxu0 0
    %266 = vmatpush2.bf16.msra.mxu0 0
    %267 = vmatprep.subr.bf16.mxu0 0
    %268 = vmatpush2.bf16.msra.mxu0 0
    %269 = vmatprep.subr.bf16.mxu0 0
    %270 = vmatpush2.bf16.msra.mxu0 0
    %271 = vmatprep.subr.bf16.mxu0 0
    %272 = vmatpush2.bf16.msra.mxu0 0
    %273 = vmatprep.mubr.bf16.mxu0 0
    %274 = vmatmul.mubr.bf16.gmra.mxu0 %v239
    %v275 = vpop.f32.mrf.mxu0
    %v276 = vadd.f32 %v224, %v275
    %v277 = vpop.f32.mrf.mxu0
    %v278 = vpop.f32.mrf.mxu0
    %v279 = vadd.f32 %v224, %v278
    %v280 = vpop.f32.mrf.mxu0
    %281 = vdwg.mxu0
    %v282 = vlaneseq
    %v283 = vand.u32 %v282, 127
    %284 = vset.pattern.permute.xlu0 0
    %285 = vperm.xlu0 %284, %v92
    %v286 = vpop.permute.xlu0 %285
    %287 = vset.pattern.permute.xlu0 0
    %288 = vperm.xlu0 %287, %v93
    %v289 = vpop.permute.xlu0 %288
    %290 = vset.pattern.permute.xlu0 0
    %291 = vperm.xlu0 %290, %v94
    %v292 = vpop.permute.xlu0 %291
    %293 = vset.pattern.permute.xlu0 0
    %294 = vperm.xlu0 %293, %v95
    %v295 = vpop.permute.xlu0 %294
    %296 = vset.pattern.permute.xlu0 0
    %297 = vperm.xlu0 %296, %v96
    %v298 = vpop.permute.xlu0 %297
    %299 = vset.pattern.permute.xlu0 0
    %300 = vperm.xlu0 %299, %v97
    %v301 = vpop.permute.xlu0 %300
    %302 = vset.pattern.permute.xlu0 0
    %303 = vperm.xlu0 %302, %v98
    %v304 = vpop.permute.xlu0 %303
    %305 = vset.pattern.permute.xlu0 0
    %306 = vperm.xlu0 %305, %v99
    %v307 = vpop.permute.xlu0 %306
    %vm308 = vcmp.eq.s32.totalorder %v283, %v286
    %vm309 = vcmp.eq.s32.totalorder %v283, %v289
    %vm310 = vcmp.eq.s32.totalorder %v283, %v292
    %vm311 = vcmp.eq.s32.totalorder %v283, %v295
    %vm312 = vcmp.eq.s32.totalorder %v283, %v298
    %vm313 = vcmp.eq.s32.totalorder %v283, %v301
    %vm314 = vcmp.eq.s32.totalorder %v283, %v304
    %vm315 = vcmp.eq.s32.totalorder %v283, %v307
    %v316 = vsel %vm308, 1.0, 0.0
    %v317 = vsel %vm309, 1.0, 0.0
    %v318 = vsel %vm310, 1.0, 0.0
    %v319 = vsel %vm311, 1.0, 0.0
    %v320 = vsel %vm312, 1.0, 0.0
    %v321 = vsel %vm313, 1.0, 0.0
    %v322 = vsel %vm314, 1.0, 0.0
    %v323 = vsel %vm315, 1.0, 0.0
    %v324 = vpack.c.bf16 %v317, %v316
    %v325 = vpack.c.bf16 %v319, %v318
    %v326 = vpack.c.bf16 %v321, %v320
    %v327 = vpack.c.bf16 %v323, %v322
    %v328 = vpack.c.bf16 %v279, %v276
    %vm329 = vcmask 130048
    %v331 = vsel %vm329, %v324, 0
    %v334 = vsel %vm329, %v325, 0
    %v337 = vsel %vm329, %v326, 0
    %v340 = vsel %vm329, %v327, 0
    %342 = vmatprep.subr.bf16.mxu0 0
    %343 = vmatpush1.bf16.msra.mxu0 0
    %344 = vmatprep.subr.bf16.mxu0 0
    %345 = vmatpush1.bf16.msra.mxu0 0
    %346 = vmatprep.subr.bf16.mxu0 0
    %347 = vmatpush1.bf16.msra.mxu0 0
    %348 = vmatprep.subr.bf16.mxu0 0
    %349 = vmatpush1.bf16.msra.mxu0 0
    %350 = vmatprep.subr.bf16.mxu0 0
    %351 = vmatpush1.bf16.msra.mxu0 0
    %352 = vmatprep.subr.bf16.mxu0 0
    %353 = vmatpush1.bf16.msra.mxu0 0
    %354 = vmatprep.subr.bf16.mxu0 0
    %355 = vmatpush1.bf16.msra.mxu0 0
    %356 = vmatprep.subr.bf16.mxu0 0
    %357 = vmatpush1.bf16.msra.mxu0 %v328
    %358 = vmatprep.subr.bf16.mxu0 0
    %359 = vmatpush2.bf16.msra.mxu0 0
    %360 = vmatprep.subr.bf16.mxu0 0
    %361 = vmatpush2.bf16.msra.mxu0 0
    %362 = vmatprep.subr.bf16.mxu0 0
    %363 = vmatpush2.bf16.msra.mxu0 0
    %364 = vmatprep.subr.bf16.mxu0 0
    %365 = vmatpush2.bf16.msra.mxu0 0
    %366 = vmatprep.subr.bf16.mxu0 0
    %367 = vmatpush2.bf16.msra.mxu0 0
    %368 = vmatprep.subr.bf16.mxu0 0
    %369 = vmatpush2.bf16.msra.mxu0 0
    %370 = vmatprep.subr.bf16.mxu0 0
    %371 = vmatpush2.bf16.msra.mxu0 0
    %372 = vmatprep.subr.bf16.mxu0 0
    %373 = vmatpush2.bf16.msra.mxu0 0
    %374 = vmatprep.mubr.bf16.mxu0 0
    %375 = vmatmul.mubr.bf16.gmra.mxu0 %v331
    %v376 = vpop.f32.mrf.mxu0
    %v377 = vadd.f32 0.0, %v376
    %v378 = vpop.f32.mrf.mxu0
    %v379 = vpop.f32.mrf.mxu0
    %v380 = vadd.f32 0.0, %v379
    %v381 = vpop.f32.mrf.mxu0
    %382 = vmatprep.mubr.bf16.mxu0 0
    %383 = vmatmul.mubr.bf16.gmra.mxu0 %v334
    %v384 = vpop.f32.mrf.mxu0
    %v385 = vadd.f32 0.0, %v384
    %v386 = vpop.f32.mrf.mxu0
    %v387 = vpop.f32.mrf.mxu0
    %v388 = vadd.f32 0.0, %v387
    %v389 = vpop.f32.mrf.mxu0
    %390 = vmatprep.mubr.bf16.mxu0 0
    %391 = vmatmul.mubr.bf16.gmra.mxu0 %v337
    %v392 = vpop.f32.mrf.mxu0
    %v393 = vadd.f32 0.0, %v392
    %v394 = vpop.f32.mrf.mxu0
    %v395 = vpop.f32.mrf.mxu0
    %v396 = vadd.f32 0.0, %v395
    %v397 = vpop.f32.mrf.mxu0
    %398 = vmatprep.mubr.bf16.mxu0 0
    %399 = vmatmul.mubr.bf16.gmra.mxu0 %v340
    %v400 = vpop.f32.mrf.mxu0
    %v401 = vadd.f32 0.0, %v400
    %v402 = vpop.f32.mrf.mxu0
    %v403 = vpop.f32.mrf.mxu0
    %v404 = vadd.f32 0.0, %v403
    %v405 = vpop.f32.mrf.mxu0
    %406 = vdwg.mxu0
    %v407 = vpack.c.bf16 %v91, %v90
    %408 = vmatprep.subr.bf16.mxu0 0
    %409 = vmatpush1.bf16.msra.mxu0 0
    %410 = vmatprep.subr.bf16.mxu0 0
    %411 = vmatpush1.bf16.msra.mxu0 0
    %412 = vmatprep.subr.bf16.mxu0 0
    %413 = vmatpush1.bf16.msra.mxu0 0
    %414 = vmatprep.subr.bf16.mxu0 0
    %415 = vmatpush1.bf16.msra.mxu0 0
    %416 = vmatprep.subr.bf16.mxu0 0
    %417 = vmatpush1.bf16.msra.mxu0 0
    %418 = vmatprep.subr.bf16.mxu0 0
    %419 = vmatpush1.bf16.msra.mxu0 0
    %420 = vmatprep.subr.bf16.mxu0 0
    %421 = vmatpush1.bf16.msra.mxu0 0
    %422 = vmatprep.subr.bf16.mxu0 0
    %423 = vmatpush1.bf16.msra.mxu0 %v407
    %424 = vmatprep.subr.bf16.mxu0 0
    %425 = vmatpush2.bf16.msra.mxu0 0
    %426 = vmatprep.subr.bf16.mxu0 0
    %427 = vmatpush2.bf16.msra.mxu0 0
    %428 = vmatprep.subr.bf16.mxu0 0
    %429 = vmatpush2.bf16.msra.mxu0 0
    %430 = vmatprep.subr.bf16.mxu0 0
    %431 = vmatpush2.bf16.msra.mxu0 0
    %432 = vmatprep.subr.bf16.mxu0 0
    %433 = vmatpush2.bf16.msra.mxu0 0
    %434 = vmatprep.subr.bf16.mxu0 0
    %435 = vmatpush2.bf16.msra.mxu0 0
    %436 = vmatprep.subr.bf16.mxu0 0
    %437 = vmatpush2.bf16.msra.mxu0 0
    %438 = vmatprep.subr.bf16.mxu0 0
    %439 = vmatpush2.bf16.msra.mxu0 0
    %440 = vmatprep.mubr.bf16.mxu0 0
    %441 = vmatmul.mubr.bf16.gmra.mxu0 %v331
    %v442 = vpop.f32.mrf.mxu0
    %v443 = vadd.f32 0.0, %v442
    %v444 = vpop.f32.mrf.mxu0
    %v445 = vpop.f32.mrf.mxu0
    %v446 = vadd.f32 0.0, %v445
    %v447 = vpop.f32.mrf.mxu0
    %448 = vmatprep.mubr.bf16.mxu0 0
    %449 = vmatmul.mubr.bf16.gmra.mxu0 %v334
    %v450 = vpop.f32.mrf.mxu0
    %v451 = vadd.f32 0.0, %v450
    %v452 = vpop.f32.mrf.mxu0
    %v453 = vpop.f32.mrf.mxu0
    %v454 = vadd.f32 0.0, %v453
    %v455 = vpop.f32.mrf.mxu0
    %456 = vmatprep.mubr.bf16.mxu0 0
    %457 = vmatmul.mubr.bf16.gmra.mxu0 %v337
    %v458 = vpop.f32.mrf.mxu0
    %v459 = vadd.f32 0.0, %v458
    %v460 = vpop.f32.mrf.mxu0
    %v461 = vpop.f32.mrf.mxu0
    %v462 = vadd.f32 0.0, %v461
    %v463 = vpop.f32.mrf.mxu0
    %464 = vmatprep.mubr.bf16.mxu0 0
    %465 = vmatmul.mubr.bf16.gmra.mxu0 %v340
    %v466 = vpop.f32.mrf.mxu0
    %v467 = vadd.f32 0.0, %v466
    %v468 = vpop.f32.mrf.mxu0
    %v469 = vpop.f32.mrf.mxu0
    %v470 = vadd.f32 0.0, %v469
    %v471 = vpop.f32.mrf.mxu0
    %472 = vdwg.mxu0
    %v473 = vsub.f32 %v443, %v90
    %v474 = vsub.f32 %v446, %v91
    %v475 = vsub.f32 %v451, %v90
    %v476 = vsub.f32 %v454, %v91
    %v477 = vsub.f32 %v459, %v90
    %v478 = vsub.f32 %v462, %v91
    %v479 = vsub.f32 %v467, %v90
    %v480 = vsub.f32 %v470, %v91
    %v481 = vld [vmem:[%s8] sm:$0x7]
    %483 = vset.pattern.permute.xlu0 0
    %484 = vperm.xlu0 %483, %v473
    %v485 = vpop.permute.xlu0 %484
    %488 = vset.pattern.permute.xlu0 0
    %489 = vperm.xlu0 %488, %v474
    %v490 = vpop.permute.xlu0 %489
    %493 = vset.pattern.permute.xlu0 0
    %494 = vperm.xlu0 %493, %v475
    %v495 = vpop.permute.xlu0 %494
    %498 = vset.pattern.permute.xlu0 0
    %499 = vperm.xlu0 %498, %v476
    %v500 = vpop.permute.xlu0 %499
    %503 = vset.pattern.permute.xlu0 0
    %504 = vperm.xlu0 %503, %v477
    %v505 = vpop.permute.xlu0 %504
    %508 = vset.pattern.permute.xlu0 0
    %509 = vperm.xlu0 %508, %v478
    %v510 = vpop.permute.xlu0 %509
    %513 = vset.pattern.permute.xlu0 0
    %514 = vperm.xlu0 %513, %v479
    %v515 = vpop.permute.xlu0 %514
    %518 = vset.pattern.permute.xlu0 0
    %519 = vperm.xlu0 %518, %v480
    %v520 = vpop.permute.xlu0 %519
    %v522 = vlaneseq
    %v523 = vshrl.u32 %v522, 7
    %v524 = vsub.s32 0, %v523
    %v525 = vrot.slane %v481, %v524
    %v526 = vmul.f32 %v485, %v525
    %v527 = vmul.f32 %v490, %v525
    %v528 = vmul.f32 %v495, %v525
    %v529 = vmul.f32 %v500, %v525
    %v530 = vmul.f32 %v505, %v525
    %v531 = vmul.f32 %v510, %v525
    %v532 = vmul.f32 %v515, %v525
    %v533 = vmul.f32 %v520, %v525
    %534 = vset.pattern.permute.xlu0 1
    %535 = vperm.xlu0 %534, %v473
    %v536 = vpop.permute.xlu0 %535
    %538 = vset.pattern.permute.xlu0 1
    %539 = vperm.xlu0 %538, %v474
    %v540 = vpop.permute.xlu0 %539
    %542 = vset.pattern.permute.xlu0 1
    %543 = vperm.xlu0 %542, %v475
    %v544 = vpop.permute.xlu0 %543
    %546 = vset.pattern.permute.xlu0 1
    %547 = vperm.xlu0 %546, %v476
    %v548 = vpop.permute.xlu0 %547
    %550 = vset.pattern.permute.xlu0 1
    %551 = vperm.xlu0 %550, %v477
    %v552 = vpop.permute.xlu0 %551
    %554 = vset.pattern.permute.xlu0 1
    %555 = vperm.xlu0 %554, %v478
    %v556 = vpop.permute.xlu0 %555
    %558 = vset.pattern.permute.xlu0 1
    %559 = vperm.xlu0 %558, %v479
    %v560 = vpop.permute.xlu0 %559
    %562 = vset.pattern.permute.xlu0 1
    %563 = vperm.xlu0 %562, %v480
    %v564 = vpop.permute.xlu0 %563
    %v566 = vlaneseq
    %v567 = vshrl.u32 %v566, 7
    %v568 = vsub.s32 1, %v567
    %v569 = vrot.slane %v481, %v568
    %v570 = vmul.f32 %v536, %v569
    %v571 = vmul.f32 %v540, %v569
    %v572 = vmul.f32 %v544, %v569
    %v573 = vmul.f32 %v548, %v569
    %v574 = vmul.f32 %v552, %v569
    %v575 = vmul.f32 %v556, %v569
    %v576 = vmul.f32 %v560, %v569
    %v577 = vmul.f32 %v564, %v569
    %v578 = vadd.f32 %v526, %v570
    %v579 = vadd.f32 %v527, %v571
    %v580 = vadd.f32 %v528, %v572
    %v581 = vadd.f32 %v529, %v573
    %v582 = vadd.f32 %v530, %v574
    %v583 = vadd.f32 %v531, %v575
    %v584 = vadd.f32 %v532, %v576
    %v585 = vadd.f32 %v533, %v577
    %586 = vset.pattern.permute.xlu0 2
    %587 = vperm.xlu0 %586, %v473
    %v588 = vpop.permute.xlu0 %587
    %590 = vset.pattern.permute.xlu0 2
    %591 = vperm.xlu0 %590, %v474
    %v592 = vpop.permute.xlu0 %591
    %594 = vset.pattern.permute.xlu0 2
    %595 = vperm.xlu0 %594, %v475
    %v596 = vpop.permute.xlu0 %595
    %598 = vset.pattern.permute.xlu0 2
    %599 = vperm.xlu0 %598, %v476
    %v600 = vpop.permute.xlu0 %599
    %602 = vset.pattern.permute.xlu0 2
    %603 = vperm.xlu0 %602, %v477
    %v604 = vpop.permute.xlu0 %603
    %606 = vset.pattern.permute.xlu0 2
    %607 = vperm.xlu0 %606, %v478
    %v608 = vpop.permute.xlu0 %607
    %610 = vset.pattern.permute.xlu0 2
    %611 = vperm.xlu0 %610, %v479
    %v612 = vpop.permute.xlu0 %611
    %614 = vset.pattern.permute.xlu0 2
    %615 = vperm.xlu0 %614, %v480
    %v616 = vpop.permute.xlu0 %615
    %v618 = vlaneseq
    %v619 = vshrl.u32 %v618, 7
    %v620 = vsub.s32 2, %v619
    %v621 = vrot.slane %v481, %v620
    %v622 = vmul.f32 %v588, %v621
    %v623 = vmul.f32 %v592, %v621
    %v624 = vmul.f32 %v596, %v621
    %v625 = vmul.f32 %v600, %v621
    %v626 = vmul.f32 %v604, %v621
    %v627 = vmul.f32 %v608, %v621
    %v628 = vmul.f32 %v612, %v621
    %v629 = vmul.f32 %v616, %v621
    %v630 = vadd.f32 %v578, %v622
    %v631 = vadd.f32 %v579, %v623
    %v632 = vadd.f32 %v580, %v624
    %v633 = vadd.f32 %v581, %v625
    %v634 = vadd.f32 %v582, %v626
    %v635 = vadd.f32 %v583, %v627
    %v636 = vadd.f32 %v584, %v628
    %v637 = vadd.f32 %v585, %v629
    %v638 = vld [vmem:[%s9] sm:$0x1]
    %v640 = vlaneseq
    %v641 = vshrl.u32 %v640, 7
    %v642 = vsub.s32 0, %v641
    %v643 = vrot.slane %v638, %v642
    %v645 = vadd.f32 %v630, %v643
    %v646 = vadd.f32 %v631, %v643
    %v647 = vadd.f32 %v632, %v643
    %v648 = vadd.f32 %v633, %v643
    %v649 = vadd.f32 %v634, %v643
    %v650 = vadd.f32 %v635, %v643
    %v651 = vadd.f32 %v636, %v643
    %v652 = vadd.f32 %v637, %v643
    %v653 = vld [vmem:[%s10] sm:$0x1]
    %v654 = vld [vmem:[%s11] sm:$0x1]
    %vm655 = vcmask 23552
    %v656 = vsel %vm655, %v645, 0.0
    %v657 = vsel %vm655, %v646, 0.0
    %v658 = vadd.f32 %v656, %v657
    %v659 = vsel %vm655, %v647, 0.0
    %v660 = vadd.f32 %v658, %v659
    %v661 = vsel %vm655, %v648, 0.0
    %v662 = vadd.f32 %v660, %v661
    %v663 = vsel %vm655, %v649, 0.0
    %v664 = vadd.f32 %v662, %v663
    %v665 = vsel %vm655, %v650, 0.0
    %v666 = vadd.f32 %v664, %v665
    %v667 = vsel %vm655, %v651, 0.0
    %v668 = vadd.f32 %v666, %v667
    %v669 = vsel %vm655, %v652, 0.0
    %v670 = vadd.f32 %v668, %v669
    %v671 = vrot.slane %v670, 4
    %v672 = vadd.f32 %v670, %v671
    %v673 = vrot.slane %v672, 2
    %v674 = vadd.f32 %v672, %v673
    %v675 = vrot.slane %v674, 1
    %v676 = vadd.f32 %v674, %v675
    %v677 = vrcp.pop 64.0
    %v678 = vmul.f32 %v676, %v677
    %v679 = vmul.f32 %v645, %v645
    %v680 = vmul.f32 %v646, %v646
    %v681 = vmul.f32 %v647, %v647
    %v682 = vmul.f32 %v648, %v648
    %v683 = vmul.f32 %v649, %v649
    %v684 = vmul.f32 %v650, %v650
    %v685 = vmul.f32 %v651, %v651
    %v686 = vmul.f32 %v652, %v652
    %v687 = vsel %vm655, %v679, 0.0
    %v688 = vsel %vm655, %v680, 0.0
    %v689 = vadd.f32 %v687, %v688
    %v690 = vsel %vm655, %v681, 0.0
    %v691 = vadd.f32 %v689, %v690
    %v692 = vsel %vm655, %v682, 0.0
    %v693 = vadd.f32 %v691, %v692
    %v694 = vsel %vm655, %v683, 0.0
    %v695 = vadd.f32 %v693, %v694
    %v696 = vsel %vm655, %v684, 0.0
    %v697 = vadd.f32 %v695, %v696
    %v698 = vsel %vm655, %v685, 0.0
    %v699 = vadd.f32 %v697, %v698
    %v700 = vsel %vm655, %v686, 0.0
    %v701 = vadd.f32 %v699, %v700
    %v702 = vrot.slane %v701, 4
    %v703 = vadd.f32 %v701, %v702
    %v704 = vrot.slane %v703, 2
    %v705 = vadd.f32 %v703, %v704
    %v706 = vrot.slane %v705, 1
    %v707 = vadd.f32 %v705, %v706
    %v708 = vmul.f32 %v707, %v677
    %v709 = vmul.f32 %v678, %v678
    %v710 = vsub.f32 %v708, %v709
    %v711 = vmax.f32 %v710, 0.0
    %v712 = vsub.f32 %v645, %v678
    %v713 = vsub.f32 %v646, %v678
    %v714 = vsub.f32 %v647, %v678
    %v715 = vsub.f32 %v648, %v678
    %v716 = vsub.f32 %v649, %v678
    %v717 = vsub.f32 %v650, %v678
    %v718 = vsub.f32 %v651, %v678
    %v719 = vsub.f32 %v652, %v678
    %v720 = vadd.f32 %v711, 1e-05
    %v721 = vrsqrt.pop %v720
    %v722 = vmul.f32 %v712, %v721
    %v723 = vmul.f32 %v713, %v721
    %v724 = vmul.f32 %v714, %v721
    %v725 = vmul.f32 %v715, %v721
    %v726 = vmul.f32 %v716, %v721
    %v727 = vmul.f32 %v717, %v721
    %v728 = vmul.f32 %v718, %v721
    %v729 = vmul.f32 %v719, %v721
    %v731 = vlaneseq
    %v732 = vshrl.u32 %v731, 7
    %v733 = vsub.s32 0, %v732
    %v734 = vrot.slane %v653, %v733
    %v736 = vmul.f32 %v722, %v734
    %v737 = vmul.f32 %v723, %v734
    %v738 = vmul.f32 %v724, %v734
    %v739 = vmul.f32 %v725, %v734
    %v740 = vmul.f32 %v726, %v734
    %v741 = vmul.f32 %v727, %v734
    %v742 = vmul.f32 %v728, %v734
    %v743 = vmul.f32 %v729, %v734
    %v745 = vlaneseq
    %v746 = vshrl.u32 %v745, 7
    %v747 = vsub.s32 0, %v746
    %v748 = vrot.slane %v654, %v747
    %v750 = vadd.f32 %v736, %v748
    %v751 = vadd.f32 %v737, %v748
    %v752 = vadd.f32 %v738, %v748
    %v753 = vadd.f32 %v739, %v748
    %v754 = vadd.f32 %v740, %v748
    %v755 = vadd.f32 %v741, %v748
    %v756 = vadd.f32 %v742, %v748
    %v757 = vadd.f32 %v743, %v748
    %v758 = vmax.f32 %v750, 0.0
    %v759 = vmax.f32 %v751, 0.0
    %v760 = vmax.f32 %v752, 0.0
    %v761 = vmax.f32 %v753, 0.0
    %v762 = vmax.f32 %v754, 0.0
    %v763 = vmax.f32 %v755, 0.0
    %v764 = vmax.f32 %v756, 0.0
    %v765 = vmax.f32 %v757, 0.0
    %v766 = vld [vmem:[%s12] sm:$0x7]
    %768 = vset.pattern.permute.xlu0 0
    %769 = vperm.xlu0 %768, %v758
    %v770 = vpop.permute.xlu0 %769
    %773 = vset.pattern.permute.xlu0 0
    %774 = vperm.xlu0 %773, %v759
    %v775 = vpop.permute.xlu0 %774
    %778 = vset.pattern.permute.xlu0 0
    %779 = vperm.xlu0 %778, %v760
    %v780 = vpop.permute.xlu0 %779
    %783 = vset.pattern.permute.xlu0 0
    %784 = vperm.xlu0 %783, %v761
    %v785 = vpop.permute.xlu0 %784
    %788 = vset.pattern.permute.xlu0 0
    %789 = vperm.xlu0 %788, %v762
    %v790 = vpop.permute.xlu0 %789
    %793 = vset.pattern.permute.xlu0 0
    %794 = vperm.xlu0 %793, %v763
    %v795 = vpop.permute.xlu0 %794
    %798 = vset.pattern.permute.xlu0 0
    %799 = vperm.xlu0 %798, %v764
    %v800 = vpop.permute.xlu0 %799
    %803 = vset.pattern.permute.xlu0 0
    %804 = vperm.xlu0 %803, %v765
    %v805 = vpop.permute.xlu0 %804
    %v807 = vlaneseq
    %v808 = vshrl.u32 %v807, 7
    %v809 = vsub.s32 0, %v808
    %v810 = vrot.slane %v766, %v809
    %v811 = vmul.f32 %v770, %v810
    %v812 = vmul.f32 %v775, %v810
    %v813 = vmul.f32 %v780, %v810
    %v814 = vmul.f32 %v785, %v810
    %v815 = vmul.f32 %v790, %v810
    %v816 = vmul.f32 %v795, %v810
    %v817 = vmul.f32 %v800, %v810
    %v818 = vmul.f32 %v805, %v810
    %819 = vset.pattern.permute.xlu0 1
    %820 = vperm.xlu0 %819, %v758
    %v821 = vpop.permute.xlu0 %820
    %823 = vset.pattern.permute.xlu0 1
    %824 = vperm.xlu0 %823, %v759
    %v825 = vpop.permute.xlu0 %824
    %827 = vset.pattern.permute.xlu0 1
    %828 = vperm.xlu0 %827, %v760
    %v829 = vpop.permute.xlu0 %828
    %831 = vset.pattern.permute.xlu0 1
    %832 = vperm.xlu0 %831, %v761
    %v833 = vpop.permute.xlu0 %832
    %835 = vset.pattern.permute.xlu0 1
    %836 = vperm.xlu0 %835, %v762
    %v837 = vpop.permute.xlu0 %836
    %839 = vset.pattern.permute.xlu0 1
    %840 = vperm.xlu0 %839, %v763
    %v841 = vpop.permute.xlu0 %840
    %843 = vset.pattern.permute.xlu0 1
    %844 = vperm.xlu0 %843, %v764
    %v845 = vpop.permute.xlu0 %844
    %847 = vset.pattern.permute.xlu0 1
    %848 = vperm.xlu0 %847, %v765
    %v849 = vpop.permute.xlu0 %848
    %v851 = vlaneseq
    %v852 = vshrl.u32 %v851, 7
    %v853 = vsub.s32 1, %v852
    %v854 = vrot.slane %v766, %v853
    %v855 = vmul.f32 %v821, %v854
    %v856 = vmul.f32 %v825, %v854
    %v857 = vmul.f32 %v829, %v854
    %v858 = vmul.f32 %v833, %v854
    %v859 = vmul.f32 %v837, %v854
    %v860 = vmul.f32 %v841, %v854
    %v861 = vmul.f32 %v845, %v854
    %v862 = vmul.f32 %v849, %v854
    %v863 = vadd.f32 %v811, %v855
    %v864 = vadd.f32 %v812, %v856
    %v865 = vadd.f32 %v813, %v857
    %v866 = vadd.f32 %v814, %v858
    %v867 = vadd.f32 %v815, %v859
    %v868 = vadd.f32 %v816, %v860
    %v869 = vadd.f32 %v817, %v861
    %v870 = vadd.f32 %v818, %v862
    %871 = vset.pattern.permute.xlu0 2
    %872 = vperm.xlu0 %871, %v758
    %v873 = vpop.permute.xlu0 %872
    %875 = vset.pattern.permute.xlu0 2
    %876 = vperm.xlu0 %875, %v759
    %v877 = vpop.permute.xlu0 %876
    %879 = vset.pattern.permute.xlu0 2
    %880 = vperm.xlu0 %879, %v760
    %v881 = vpop.permute.xlu0 %880
    %883 = vset.pattern.permute.xlu0 2
    %884 = vperm.xlu0 %883, %v761
    %v885 = vpop.permute.xlu0 %884
    %887 = vset.pattern.permute.xlu0 2
    %888 = vperm.xlu0 %887, %v762
    %v889 = vpop.permute.xlu0 %888
    %891 = vset.pattern.permute.xlu0 2
    %892 = vperm.xlu0 %891, %v763
    %v893 = vpop.permute.xlu0 %892
    %895 = vset.pattern.permute.xlu0 2
    %896 = vperm.xlu0 %895, %v764
    %v897 = vpop.permute.xlu0 %896
    %899 = vset.pattern.permute.xlu0 2
    %900 = vperm.xlu0 %899, %v765
    %v901 = vpop.permute.xlu0 %900
    %v903 = vlaneseq
    %v904 = vshrl.u32 %v903, 7
    %v905 = vsub.s32 2, %v904
    %v906 = vrot.slane %v766, %v905
    %v907 = vmul.f32 %v873, %v906
    %v908 = vmul.f32 %v877, %v906
    %v909 = vmul.f32 %v881, %v906
    %v910 = vmul.f32 %v885, %v906
    %v911 = vmul.f32 %v889, %v906
    %v912 = vmul.f32 %v893, %v906
    %v913 = vmul.f32 %v897, %v906
    %v914 = vmul.f32 %v901, %v906
    %v915 = vadd.f32 %v863, %v907
    %v916 = vadd.f32 %v864, %v908
    %v917 = vadd.f32 %v865, %v909
    %v918 = vadd.f32 %v866, %v910
    %v919 = vadd.f32 %v867, %v911
    %v920 = vadd.f32 %v868, %v912
    %v921 = vadd.f32 %v869, %v913
    %v922 = vadd.f32 %v870, %v914
    %v923 = vld [vmem:[%s13] sm:$0x1]
    %v925 = vlaneseq
    %v926 = vshrl.u32 %v925, 7
    %v927 = vsub.s32 0, %v926
    %v928 = vrot.slane %v923, %v927
    %v930 = vadd.f32 %v915, %v928
    %v931 = vadd.f32 %v916, %v928
    %v932 = vadd.f32 %v917, %v928
    %v933 = vadd.f32 %v918, %v928
    %v934 = vadd.f32 %v919, %v928
    %v935 = vadd.f32 %v920, %v928
    %v936 = vadd.f32 %v921, %v928
    %v937 = vadd.f32 %v922, %v928
    %940 = vrot.lane.b32.xlu0 %v276, 96
    %v941 = vpop.permute.xlu0 %940
    %942 = vrot.lane.b32.xlu0 %v279, 96
    %v943 = vpop.permute.xlu0 %942
    %v946 = vsub.f32 %v377, %v941
    %v947 = vsub.f32 %v380, %v943
    %v948 = vsub.f32 %v385, %v941
    %v949 = vsub.f32 %v388, %v943
    %v950 = vsub.f32 %v393, %v941
    %v951 = vsub.f32 %v396, %v943
    %v952 = vsub.f32 %v401, %v941
    %v953 = vsub.f32 %v404, %v943
    %962 = vrot.lane.b32.xlu0 %v930, 32
    %v963 = vpop.permute.xlu0 %962
    %964 = vrot.lane.b32.xlu0 %v931, 32
    %v965 = vpop.permute.xlu0 %964
    %966 = vrot.lane.b32.xlu0 %v932, 32
    %v967 = vpop.permute.xlu0 %966
    %968 = vrot.lane.b32.xlu0 %v933, 32
    %v969 = vpop.permute.xlu0 %968
    %970 = vrot.lane.b32.xlu0 %v934, 32
    %v971 = vpop.permute.xlu0 %970
    %972 = vrot.lane.b32.xlu0 %v935, 32
    %v973 = vpop.permute.xlu0 %972
    %974 = vrot.lane.b32.xlu0 %v936, 32
    %v975 = vpop.permute.xlu0 %974
    %976 = vrot.lane.b32.xlu0 %v937, 32
    %v977 = vpop.permute.xlu0 %976
    %v986 = vadd.f32 %v946, %v963
    %v987 = vadd.f32 %v947, %v965
    %v988 = vadd.f32 %v948, %v967
    %v989 = vadd.f32 %v949, %v969
    %v990 = vadd.f32 %v950, %v971
    %v991 = vadd.f32 %v951, %v973
    %v992 = vadd.f32 %v952, %v975
    %v993 = vadd.f32 %v953, %v977
    %v994 = vld [vmem:[%s14] sm:$0x1]
    %v995 = vld [vmem:[%s15] sm:$0x1]
    %vm996 = vcmask 523520
    %v997 = vsel %vm996, %v986, 0.0
    %v998 = vsel %vm996, %v987, 0.0
    %v999 = vadd.f32 %v997, %v998
    %v1000 = vsel %vm996, %v988, 0.0
    %v1001 = vadd.f32 %v999, %v1000
    %v1002 = vsel %vm996, %v989, 0.0
    %v1003 = vadd.f32 %v1001, %v1002
    %v1004 = vsel %vm996, %v990, 0.0
    %v1005 = vadd.f32 %v1003, %v1004
    %v1006 = vsel %vm996, %v991, 0.0
    %v1007 = vadd.f32 %v1005, %v1006
    %v1008 = vsel %vm996, %v992, 0.0
    %v1009 = vadd.f32 %v1007, %v1008
    %v1010 = vsel %vm996, %v993, 0.0
    %v1011 = vadd.f32 %v1009, %v1010
    %v1012 = vrot.slane %v1011, 4
    %v1013 = vadd.f32 %v1011, %v1012
    %v1014 = vrot.slane %v1013, 2
    %v1015 = vadd.f32 %v1013, %v1014
    %v1016 = vrot.slane %v1015, 1
    %v1017 = vadd.f32 %v1015, %v1016
    %v1018 = vmul.f32 %v1017, %v677
    %v1019 = vmul.f32 %v986, %v986
    %v1020 = vmul.f32 %v987, %v987
    %v1021 = vmul.f32 %v988, %v988
    %v1022 = vmul.f32 %v989, %v989
    %v1023 = vmul.f32 %v990, %v990
    %v1024 = vmul.f32 %v991, %v991
    %v1025 = vmul.f32 %v992, %v992
    %v1026 = vmul.f32 %v993, %v993
    %v1027 = vsel %vm996, %v1019, 0.0
    %v1028 = vsel %vm996, %v1020, 0.0
    %v1029 = vadd.f32 %v1027, %v1028
    %v1030 = vsel %vm996, %v1021, 0.0
    %v1031 = vadd.f32 %v1029, %v1030
    %v1032 = vsel %vm996, %v1022, 0.0
    %v1033 = vadd.f32 %v1031, %v1032
    %v1034 = vsel %vm996, %v1023, 0.0
    %v1035 = vadd.f32 %v1033, %v1034
    %v1036 = vsel %vm996, %v1024, 0.0
    %v1037 = vadd.f32 %v1035, %v1036
    %v1038 = vsel %vm996, %v1025, 0.0
    %v1039 = vadd.f32 %v1037, %v1038
    %v1040 = vsel %vm996, %v1026, 0.0
    %v1041 = vadd.f32 %v1039, %v1040
    %v1042 = vrot.slane %v1041, 4
    %v1043 = vadd.f32 %v1041, %v1042
    %v1044 = vrot.slane %v1043, 2
    %v1045 = vadd.f32 %v1043, %v1044
    %v1046 = vrot.slane %v1045, 1
    %v1047 = vadd.f32 %v1045, %v1046
    %v1048 = vmul.f32 %v1047, %v677
    %v1049 = vmul.f32 %v1018, %v1018
    %v1050 = vsub.f32 %v1048, %v1049
    %v1051 = vmax.f32 %v1050, 0.0
    %v1052 = vsub.f32 %v986, %v1018
    %v1053 = vsub.f32 %v987, %v1018
    %v1054 = vsub.f32 %v988, %v1018
    %v1055 = vsub.f32 %v989, %v1018
    %v1056 = vsub.f32 %v990, %v1018
    %v1057 = vsub.f32 %v991, %v1018
    %v1058 = vsub.f32 %v992, %v1018
    %v1059 = vsub.f32 %v993, %v1018
    %v1060 = vadd.f32 %v1051, 1e-05
    %v1061 = vrsqrt.pop %v1060
    %v1062 = vmul.f32 %v1052, %v1061
    %v1063 = vmul.f32 %v1053, %v1061
    %v1064 = vmul.f32 %v1054, %v1061
    %v1065 = vmul.f32 %v1055, %v1061
    %v1066 = vmul.f32 %v1056, %v1061
    %v1067 = vmul.f32 %v1057, %v1061
    %v1068 = vmul.f32 %v1058, %v1061
    %v1069 = vmul.f32 %v1059, %v1061
    %v1071 = vlaneseq
    %v1072 = vshrl.u32 %v1071, 7
    %v1073 = vsub.s32 0, %v1072
    %v1074 = vrot.slane %v994, %v1073
    %1075 = vrot.lane.b32.xlu0 %v1074, 32
    %v1076 = vpop.permute.xlu0 %1075
    %v1078 = vmul.f32 %v1062, %v1076
    %v1079 = vmul.f32 %v1063, %v1076
    %v1080 = vmul.f32 %v1064, %v1076
    %v1081 = vmul.f32 %v1065, %v1076
    %v1082 = vmul.f32 %v1066, %v1076
    %v1083 = vmul.f32 %v1067, %v1076
    %v1084 = vmul.f32 %v1068, %v1076
    %v1085 = vmul.f32 %v1069, %v1076
    %v1087 = vlaneseq
    %v1088 = vshrl.u32 %v1087, 7
    %v1089 = vsub.s32 0, %v1088
    %v1090 = vrot.slane %v995, %v1089
    %1091 = vrot.lane.b32.xlu0 %v1090, 32
    %v1092 = vpop.permute.xlu0 %1091
    %v1094 = vadd.f32 %v1078, %v1092
    %v1095 = vadd.f32 %v1079, %v1092
    %v1096 = vadd.f32 %v1080, %v1092
    %v1097 = vadd.f32 %v1081, %v1092
    %v1098 = vadd.f32 %v1082, %v1092
    %v1099 = vadd.f32 %v1083, %v1092
    %v1100 = vadd.f32 %v1084, %v1092
    %v1101 = vadd.f32 %v1085, %v1092
    %v1102 = vmax.f32 %v1094, 0.0
    %v1103 = vmax.f32 %v1095, 0.0
    %v1104 = vmax.f32 %v1096, 0.0
    %v1105 = vmax.f32 %v1097, 0.0
    %v1106 = vmax.f32 %v1098, 0.0
    %v1107 = vmax.f32 %v1099, 0.0
    %v1108 = vmax.f32 %v1100, 0.0
    %v1109 = vmax.f32 %v1101, 0.0
    %v1110 = vpack.c.bf16 %v1103, %v1102
    %v1111 = vpack.c.bf16 %v1105, %v1104
    %v1112 = vpack.c.bf16 %v1107, %v1106
    %v1113 = vpack.c.bf16 %v1109, %v1108
    %v1114 = vld [vmem:[%s16] sm:$0xf]
    %v1115 = vld [vmem:[%s16 + $0x4] sm:$0xf]
    %v1116 = vld [vmem:[%s16 + $0x8] sm:$0xf]
    %v1117 = vld [vmem:[%s16 + $0xc] sm:$0xf]
    %v1118 = vld [vmem:[%s17] sm:$0x1]
    %v1120 = vlaneseq
    %v1121 = vshrl.u32 %v1120, 7
    %v1122 = vsub.s32 0, %v1121
    %v1123 = vrot.slane %v1118, %v1122
    %1129 = vrot.lane.b32.xlu0 %v1110, 96
    %v1130 = vpop.permute.xlu0 %1129
    %1131 = vrot.lane.b32.xlu0 %v1111, 96
    %v1132 = vpop.permute.xlu0 %1131
    %1133 = vrot.lane.b32.xlu0 %v1112, 96
    %v1134 = vpop.permute.xlu0 %1133
    %1135 = vrot.lane.b32.xlu0 %v1113, 96
    %v1136 = vpop.permute.xlu0 %1135
    %v1141 = vunpack.c.l.b16 %v1114
    %v1142 = vunpack.c.l.b16 %v1115
    %v1143 = vunpack.c.l.b16 %v1116
    %v1144 = vunpack.c.l.b16 %v1117
    %v1145 = vpack.c.b16 %v1142, %v1141
    %v1146 = vpack.c.b16 %v1144, %v1143
    %v1150 = vsel %vm117, %v1130, 0
    %v1153 = vsel %vm117, %v1132, 0
    %v1156 = vsel %vm117, %v1134, 0
    %v1159 = vsel %vm117, %v1136, 0
    %1161 = vmatprep.subr.bf16.mxu0 0
    %1162 = vmatpush1.bf16.msra.mxu0 0
    %1163 = vmatprep.subr.bf16.mxu0 0
    %1164 = vmatpush1.bf16.msra.mxu0 0
    %1165 = vmatprep.subr.bf16.mxu0 0
    %1166 = vmatpush1.bf16.msra.mxu0 0
    %1167 = vmatprep.subr.bf16.mxu0 0
    %1168 = vmatpush1.bf16.msra.mxu0 0
    %1169 = vmatprep.subr.bf16.mxu0 0
    %1170 = vmatpush1.bf16.msra.mxu0 0
    %1171 = vmatprep.subr.bf16.mxu0 0
    %1172 = vmatpush1.bf16.msra.mxu0 0
    %1173 = vmatprep.subr.bf16.mxu0 0
    %1174 = vmatpush1.bf16.msra.mxu0 %v1146
    %1175 = vmatprep.subr.bf16.mxu0 0
    %1176 = vmatpush1.bf16.msra.mxu0 %v1145
    %1177 = vmatprep.subr.bf16.mxu0 0
    %1178 = vmatpush2.bf16.msra.mxu0 0
    %1179 = vmatprep.subr.bf16.mxu0 0
    %1180 = vmatpush2.bf16.msra.mxu0 0
    %1181 = vmatprep.subr.bf16.mxu0 0
    %1182 = vmatpush2.bf16.msra.mxu0 0
    %1183 = vmatprep.subr.bf16.mxu0 0
    %1184 = vmatpush2.bf16.msra.mxu0 0
    %1185 = vmatprep.subr.bf16.mxu0 0
    %1186 = vmatpush2.bf16.msra.mxu0 0
    %1187 = vmatprep.subr.bf16.mxu0 0
    %1188 = vmatpush2.bf16.msra.mxu0 0
    %1189 = vmatprep.subr.bf16.mxu0 0
    %1190 = vmatpush2.bf16.msra.mxu0 0
    %1191 = vmatprep.subr.bf16.mxu0 0
    %1192 = vmatpush2.bf16.msra.mxu0 0
    %1193 = vmatprep.mubr.bf16.mxu0 0
    %1194 = vmatmul.mubr.bf16.gmra.mxu0 %v1150
    %v1195 = vpop.f32.mrf.mxu0
    %v1196 = vadd.f32 %v1123, %v1195
    %v1197 = vpop.f32.mrf.mxu0
    %v1198 = vpop.f32.mrf.mxu0
    %v1199 = vadd.f32 %v1123, %v1198
    %v1200 = vpop.f32.mrf.mxu0
    %1201 = vmatprep.mubr.bf16.mxu0 0
    %1202 = vmatmul.mubr.bf16.gmra.mxu0 %v1153
    %v1203 = vpop.f32.mrf.mxu0
    %v1204 = vadd.f32 %v1123, %v1203
    %v1205 = vpop.f32.mrf.mxu0
    %v1206 = vpop.f32.mrf.mxu0
    %v1207 = vadd.f32 %v1123, %v1206
    %v1208 = vpop.f32.mrf.mxu0
    %1209 = vmatprep.mubr.bf16.mxu0 0
    %1210 = vmatmul.mubr.bf16.gmra.mxu0 %v1156
    %v1211 = vpop.f32.mrf.mxu0
    %v1212 = vadd.f32 %v1123, %v1211
    %v1213 = vpop.f32.mrf.mxu0
    %v1214 = vpop.f32.mrf.mxu0
    %v1215 = vadd.f32 %v1123, %v1214
    %v1216 = vpop.f32.mrf.mxu0
    %1217 = vmatprep.mubr.bf16.mxu0 0
    %1218 = vmatmul.mubr.bf16.gmra.mxu0 %v1159
    %v1219 = vpop.f32.mrf.mxu0
    %v1220 = vadd.f32 %v1123, %v1219
    %v1221 = vpop.f32.mrf.mxu0
    %v1222 = vpop.f32.mrf.mxu0
    %v1223 = vadd.f32 %v1123, %v1222
    %v1224 = vpop.f32.mrf.mxu0
    %1225 = vdwg.mxu0
    %v1226 = vld [vmem:[%s18] sm:$0x1]
    %v1227 = vld [vmem:[%s19] sm:$0x1]
    %vm1228 = vcmask 31744
    %v1229 = vsel %vm1228, %v1196, 0.0
    %v1230 = vsel %vm1228, %v1199, 0.0
    %v1231 = vadd.f32 %v1229, %v1230
    %v1232 = vsel %vm1228, %v1204, 0.0
    %v1233 = vadd.f32 %v1231, %v1232
    %v1234 = vsel %vm1228, %v1207, 0.0
    %v1235 = vadd.f32 %v1233, %v1234
    %v1236 = vsel %vm1228, %v1212, 0.0
    %v1237 = vadd.f32 %v1235, %v1236
    %v1238 = vsel %vm1228, %v1215, 0.0
    %v1239 = vadd.f32 %v1237, %v1238
    %v1240 = vsel %vm1228, %v1220, 0.0
    %v1241 = vadd.f32 %v1239, %v1240
    %v1242 = vsel %vm1228, %v1223, 0.0
    %v1243 = vadd.f32 %v1241, %v1242
    %v1244 = vrot.slane %v1243, 4
    %v1245 = vadd.f32 %v1243, %v1244
    %v1246 = vrot.slane %v1245, 2
    %v1247 = vadd.f32 %v1245, %v1246
    %v1248 = vrot.slane %v1247, 1
    %v1249 = vadd.f32 %v1247, %v1248
    %v1250 = vmul.f32 %v1249, %v677
    %v1251 = vmul.f32 %v1196, %v1196
    %v1252 = vmul.f32 %v1199, %v1199
    %v1253 = vmul.f32 %v1204, %v1204
    %v1254 = vmul.f32 %v1207, %v1207
    %v1255 = vmul.f32 %v1212, %v1212
    %v1256 = vmul.f32 %v1215, %v1215
    %v1257 = vmul.f32 %v1220, %v1220
    %v1258 = vmul.f32 %v1223, %v1223
    %v1259 = vsel %vm1228, %v1251, 0.0
    %v1260 = vsel %vm1228, %v1252, 0.0
    %v1261 = vadd.f32 %v1259, %v1260
    %v1262 = vsel %vm1228, %v1253, 0.0
    %v1263 = vadd.f32 %v1261, %v1262
    %v1264 = vsel %vm1228, %v1254, 0.0
    %v1265 = vadd.f32 %v1263, %v1264
    %v1266 = vsel %vm1228, %v1255, 0.0
    %v1267 = vadd.f32 %v1265, %v1266
    %v1268 = vsel %vm1228, %v1256, 0.0
    %v1269 = vadd.f32 %v1267, %v1268
    %v1270 = vsel %vm1228, %v1257, 0.0
    %v1271 = vadd.f32 %v1269, %v1270
    %v1272 = vsel %vm1228, %v1258, 0.0
    %v1273 = vadd.f32 %v1271, %v1272
    %v1274 = vrot.slane %v1273, 4
    %v1275 = vadd.f32 %v1273, %v1274
    %v1276 = vrot.slane %v1275, 2
    %v1277 = vadd.f32 %v1275, %v1276
    %v1278 = vrot.slane %v1277, 1
    %v1279 = vadd.f32 %v1277, %v1278
    %v1280 = vmul.f32 %v1279, %v677
    %v1281 = vmul.f32 %v1250, %v1250
    %v1282 = vsub.f32 %v1280, %v1281
    %v1283 = vmax.f32 %v1282, 0.0
    %v1284 = vsub.f32 %v1196, %v1250
    %v1285 = vsub.f32 %v1199, %v1250
    %v1286 = vsub.f32 %v1204, %v1250
    %v1287 = vsub.f32 %v1207, %v1250
    %v1288 = vsub.f32 %v1212, %v1250
    %v1289 = vsub.f32 %v1215, %v1250
    %v1290 = vsub.f32 %v1220, %v1250
    %v1291 = vsub.f32 %v1223, %v1250
    %v1292 = vadd.f32 %v1283, 1e-05
    %v1293 = vrsqrt.pop %v1292
    %v1294 = vmul.f32 %v1284, %v1293
    %v1295 = vmul.f32 %v1285, %v1293
    %v1296 = vmul.f32 %v1286, %v1293
    %v1297 = vmul.f32 %v1287, %v1293
    %v1298 = vmul.f32 %v1288, %v1293
    %v1299 = vmul.f32 %v1289, %v1293
    %v1300 = vmul.f32 %v1290, %v1293
    %v1301 = vmul.f32 %v1291, %v1293
    %v1303 = vlaneseq
    %v1304 = vshrl.u32 %v1303, 7
    %v1305 = vsub.s32 0, %v1304
    %v1306 = vrot.slane %v1226, %v1305
    %v1308 = vmul.f32 %v1294, %v1306
    %v1309 = vmul.f32 %v1295, %v1306
    %v1310 = vmul.f32 %v1296, %v1306
    %v1311 = vmul.f32 %v1297, %v1306
    %v1312 = vmul.f32 %v1298, %v1306
    %v1313 = vmul.f32 %v1299, %v1306
    %v1314 = vmul.f32 %v1300, %v1306
    %v1315 = vmul.f32 %v1301, %v1306
    %v1317 = vlaneseq
    %v1318 = vshrl.u32 %v1317, 7
    %v1319 = vsub.s32 0, %v1318
    %v1320 = vrot.slane %v1227, %v1319
    %v1322 = vadd.f32 %v1308, %v1320
    %v1323 = vadd.f32 %v1309, %v1320
    %v1324 = vadd.f32 %v1310, %v1320
    %v1325 = vadd.f32 %v1311, %v1320
    %v1326 = vadd.f32 %v1312, %v1320
    %v1327 = vadd.f32 %v1313, %v1320
    %v1328 = vadd.f32 %v1314, %v1320
    %v1329 = vadd.f32 %v1315, %v1320
    %v1330 = vmax.f32 %v1322, 0.0
    %v1331 = vmax.f32 %v1323, 0.0
    %v1332 = vmax.f32 %v1324, 0.0
    %v1333 = vmax.f32 %v1325, 0.0
    %v1334 = vmax.f32 %v1326, 0.0
    %v1335 = vmax.f32 %v1327, 0.0
    %v1336 = vmax.f32 %v1328, 0.0
    %v1337 = vmax.f32 %v1329, 0.0
    %v1338 = vpack.c.bf16 %v1331, %v1330
    %v1339 = vpack.c.bf16 %v1333, %v1332
    %v1340 = vpack.c.bf16 %v1335, %v1334
    %v1341 = vpack.c.bf16 %v1337, %v1336
    %v1342 = vld [vmem:[%s20] sm:$0x3]
    %v1343 = vld [vmem:[%s21] sm:$0x1]
    %v1345 = vlaneseq
    %v1346 = vshrl.u32 %v1345, 7
    %v1347 = vsub.s32 0, %v1346
    %v1348 = vrot.slane %v1343, %v1347
    %v1351 = vsel %vm1228, %v1338, 0
    %v1354 = vsel %vm1228, %v1339, 0
    %v1357 = vsel %vm1228, %v1340, 0
    %v1360 = vsel %vm1228, %v1341, 0
    %vm1362 = vcmask 1041408
    %v1364 = vsel %vm1362, %v1342, 0
    %1366 = vmatprep.subr.bf16.mxu0 0
    %1367 = vmatpush1.bf16.msra.mxu0 0
    %1368 = vmatprep.subr.bf16.mxu0 0
    %1369 = vmatpush1.bf16.msra.mxu0 0
    %1370 = vmatprep.subr.bf16.mxu0 0
    %1371 = vmatpush1.bf16.msra.mxu0 0
    %1372 = vmatprep.subr.bf16.mxu0 0
    %1373 = vmatpush1.bf16.msra.mxu0 0
    %1374 = vmatprep.subr.bf16.mxu0 0
    %1375 = vmatpush1.bf16.msra.mxu0 0
    %1376 = vmatprep.subr.bf16.mxu0 0
    %1377 = vmatpush1.bf16.msra.mxu0 0
    %1378 = vmatprep.subr.bf16.mxu0 0
    %1379 = vmatpush1.bf16.msra.mxu0 0
    %1380 = vmatprep.subr.bf16.mxu0 0
    %1381 = vmatpush1.bf16.msra.mxu0 %v1364
    %1382 = vmatprep.subr.bf16.mxu0 0
    %1383 = vmatpush2.bf16.msra.mxu0 0
    %1384 = vmatprep.subr.bf16.mxu0 0
    %1385 = vmatpush2.bf16.msra.mxu0 0
    %1386 = vmatprep.subr.bf16.mxu0 0
    %1387 = vmatpush2.bf16.msra.mxu0 0
    %1388 = vmatprep.subr.bf16.mxu0 0
    %1389 = vmatpush2.bf16.msra.mxu0 0
    %1390 = vmatprep.subr.bf16.mxu0 0
    %1391 = vmatpush2.bf16.msra.mxu0 0
    %1392 = vmatprep.subr.bf16.mxu0 0
    %1393 = vmatpush2.bf16.msra.mxu0 0
    %1394 = vmatprep.subr.bf16.mxu0 0
    %1395 = vmatpush2.bf16.msra.mxu0 0
    %1396 = vmatprep.subr.bf16.mxu0 0
    %1397 = vmatpush2.bf16.msra.mxu0 0
    %1398 = vmatprep.mubr.bf16.mxu0 0
    %1399 = vmatmul.mubr.bf16.gmra.mxu0 %v1351
    %v1400 = vpop.f32.mrf.mxu0
    %v1401 = vadd.f32 %v1348, %v1400
    %v1402 = vpop.f32.mrf.mxu0
    %v1403 = vpop.f32.mrf.mxu0
    %v1404 = vadd.f32 %v1348, %v1403
    %v1405 = vpop.f32.mrf.mxu0
    %1406 = vmatprep.mubr.bf16.mxu0 0
    %1407 = vmatmul.mubr.bf16.gmra.mxu0 %v1354
    %v1408 = vpop.f32.mrf.mxu0
    %v1409 = vadd.f32 %v1348, %v1408
    %v1410 = vpop.f32.mrf.mxu0
    %v1411 = vpop.f32.mrf.mxu0
    %v1412 = vadd.f32 %v1348, %v1411
    %v1413 = vpop.f32.mrf.mxu0
    %1414 = vmatprep.mubr.bf16.mxu0 0
    %1415 = vmatmul.mubr.bf16.gmra.mxu0 %v1357
    %v1416 = vpop.f32.mrf.mxu0
    %v1417 = vadd.f32 %v1348, %v1416
    %v1418 = vpop.f32.mrf.mxu0
    %v1419 = vpop.f32.mrf.mxu0
    %v1420 = vadd.f32 %v1348, %v1419
    %v1421 = vpop.f32.mrf.mxu0
    %1422 = vmatprep.mubr.bf16.mxu0 0
    %1423 = vmatmul.mubr.bf16.gmra.mxu0 %v1360
    %v1424 = vpop.f32.mrf.mxu0
    %v1425 = vadd.f32 %v1348, %v1424
    %v1426 = vpop.f32.mrf.mxu0
    %v1427 = vpop.f32.mrf.mxu0
    %v1428 = vadd.f32 %v1348, %v1427
    %v1429 = vpop.f32.mrf.mxu0
    %1430 = vdwg.mxu0
    %v1431 = vmax.f32 %v1401, %v1409
    %v1432 = vmax.f32 %v1404, %v1412
    %v1433 = vmax.f32 %v1431, %v1417
    %v1434 = vmax.f32 %v1432, %v1420
    %v1435 = vmax.f32 %v1433, %v1425
    %v1436 = vmax.f32 %v1434, %v1428
    %v1437 = vsub.f32 %v1401, %v1435
    %v1438 = vsub.f32 %v1404, %v1436
    %v1439 = vsub.f32 %v1409, %v1435
    %v1440 = vsub.f32 %v1412, %v1436
    %v1441 = vsub.f32 %v1417, %v1435
    %v1442 = vsub.f32 %v1420, %v1436
    %v1443 = vsub.f32 %v1425, %v1435
    %v1444 = vsub.f32 %v1428, %v1436
    %v1445 = vmul.f32 %v1437, 1.442695
    %v1446 = vpow.pop %v1445
    %v1447 = vmul.f32 %v1438, 1.442695
    %v1448 = vpow.pop %v1447
    %v1449 = vmul.f32 %v1439, 1.442695
    %v1450 = vpow.pop %v1449
    %v1451 = vmul.f32 %v1440, 1.442695
    %v1452 = vpow.pop %v1451
    %v1453 = vmul.f32 %v1441, 1.442695
    %v1454 = vpow.pop %v1453
    %v1455 = vmul.f32 %v1442, 1.442695
    %v1456 = vpow.pop %v1455
    %v1457 = vmul.f32 %v1443, 1.442695
    %v1458 = vpow.pop %v1457
    %v1459 = vmul.f32 %v1444, 1.442695
    %v1460 = vpow.pop %v1459
    %v1461 = vadd.f32 %v1446, %v1450
    %v1462 = vadd.f32 %v1448, %v1452
    %v1463 = vadd.f32 %v1461, %v1454
    %v1464 = vadd.f32 %v1462, %v1456
    %v1465 = vadd.f32 %v1463, %v1458
    %v1466 = vadd.f32 %v1464, %v1460
    %v1467 = vadd.f32 %v1465, 1e-16
    %v1468 = vadd.f32 %v1466, 1e-16
    %v1469 = vrcp.pop %v1467
    %v1470 = vrcp.pop %v1468
    %v1471 = vmul.f32 %v1446, %v1469
    %v1472 = vmul.f32 %v1448, %v1470
    %v1473 = vmul.f32 %v1450, %v1469
    %v1474 = vmul.f32 %v1452, %v1470
    %v1475 = vmul.f32 %v1454, %v1469
    %v1476 = vmul.f32 %v1456, %v1470
    %v1477 = vmul.f32 %v1458, %v1469
    %v1478 = vmul.f32 %v1460, %v1470
    %v1479 = vadd.f32 %v377, %v930
    %v1480 = vadd.f32 %v380, %v931
    %v1481 = vadd.f32 %v385, %v932
    %v1482 = vadd.f32 %v388, %v933
    %v1483 = vadd.f32 %v393, %v934
    %v1484 = vadd.f32 %v396, %v935
    %v1485 = vadd.f32 %v401, %v936
    %v1486 = vadd.f32 %v404, %v937
    %v1487 = vmul.f32 %v1479, %v1471
    %v1488 = vmul.f32 %v1480, %v1472
    %v1489 = vmul.f32 %v1481, %v1473
    %v1490 = vmul.f32 %v1482, %v1474
    %v1491 = vmul.f32 %v1483, %v1475
    %v1492 = vmul.f32 %v1484, %v1476
    %v1493 = vmul.f32 %v1485, %v1477
    %v1494 = vmul.f32 %v1486, %v1478
    %v1495 = vadd.f32 %v1487, %v1489
    %v1496 = vadd.f32 %v1488, %v1490
    %v1497 = vadd.f32 %v1495, %v1491
    %v1498 = vadd.f32 %v1496, %v1492
    %v1499 = vadd.f32 %v1497, %v1493
    %v1500 = vadd.f32 %v1498, %v1494
    %v1501 = vld [vmem:[%s23] sm:$0x1]
    %v1502 = vld [vmem:[%s24] sm:$0x1]
    %v1503 = vsel %vm117, %v1499, 0.0
    %v1504 = vsel %vm117, %v1500, 0.0
    %v1505 = vadd.f32 %v1503, %v1504
    %v1506 = vrot.slane %v1505, 4
    %v1507 = vadd.f32 %v1505, %v1506
    %v1508 = vrot.slane %v1507, 2
    %v1509 = vadd.f32 %v1507, %v1508
    %v1510 = vrot.slane %v1509, 1
    %v1511 = vadd.f32 %v1509, %v1510
    %v1512 = vmul.f32 %v1511, %v173
    %v1513 = vmul.f32 %v1499, %v1499
    %v1514 = vmul.f32 %v1500, %v1500
    %v1515 = vsel %vm117, %v1513, 0.0
    %v1516 = vsel %vm117, %v1514, 0.0
    %v1517 = vadd.f32 %v1515, %v1516
    %v1518 = vrot.slane %v1517, 4
    %v1519 = vadd.f32 %v1517, %v1518
    %v1520 = vrot.slane %v1519, 2
    %v1521 = vadd.f32 %v1519, %v1520
    %v1522 = vrot.slane %v1521, 1
    %v1523 = vadd.f32 %v1521, %v1522
    %v1524 = vmul.f32 %v1523, %v173
    %v1525 = vmul.f32 %v1512, %v1512
    %v1526 = vsub.f32 %v1524, %v1525
    %v1527 = vmax.f32 %v1526, 0.0
    %v1528 = vsub.f32 %v1499, %v1512
    %v1529 = vsub.f32 %v1500, %v1512
    %v1530 = vadd.f32 %v1527, 1e-05
    %v1531 = vrsqrt.pop %v1530
    %v1532 = vmul.f32 %v1528, %v1531
    %v1533 = vmul.f32 %v1529, %v1531
    %v1535 = vlaneseq
    %v1536 = vshrl.u32 %v1535, 7
    %v1537 = vsub.s32 0, %v1536
    %v1538 = vrot.slane %v1501, %v1537
    %v1540 = vmul.f32 %v1532, %v1538
    %v1541 = vmul.f32 %v1533, %v1538
    %v1543 = vlaneseq
    %v1544 = vshrl.u32 %v1543, 7
    %v1545 = vsub.s32 0, %v1544
    %v1546 = vrot.slane %v1502, %v1545
    %v1548 = vadd.f32 %v1540, %v1546
    %v1549 = vadd.f32 %v1541, %v1546
    %v1550 = vmax.f32 %v1548, 0.0
    %v1551 = vmax.f32 %v1549, 0.0
    %v1552 = vpack.c.bf16 %v1551, %v1550
    %v1553 = vld [vmem:[%s22] sm:$0xf]
    %v1554 = vld [vmem:[%s22 + $0x4] sm:$0xf]
    %v1555 = vld [vmem:[%s22 + $0x8] sm:$0xf]
    %v1556 = vld [vmem:[%s22 + $0xc] sm:$0xf]
    %v1561 = vunpack.c.l.b16 %v1553
    %v1562 = vunpack.c.l.b16 %v1554
    %v1563 = vunpack.c.l.b16 %v1555
    %v1564 = vunpack.c.l.b16 %v1556
    %v1565 = vpack.c.b16 %v1562, %v1561
    %v1566 = vpack.c.b16 %v1564, %v1563
    %v1570 = vsel %vm117, %v1552, 0
    %1572 = vmatprep.subr.bf16.mxu0 0
    %1573 = vmatpush1.bf16.msra.mxu0 0
    %1574 = vmatprep.subr.bf16.mxu0 0
    %1575 = vmatpush1.bf16.msra.mxu0 0
    %1576 = vmatprep.subr.bf16.mxu0 0
    %1577 = vmatpush1.bf16.msra.mxu0 0
    %1578 = vmatprep.subr.bf16.mxu0 0
    %1579 = vmatpush1.bf16.msra.mxu0 0
    %1580 = vmatprep.subr.bf16.mxu0 0
    %1581 = vmatpush1.bf16.msra.mxu0 0
    %1582 = vmatprep.subr.bf16.mxu0 0
    %1583 = vmatpush1.bf16.msra.mxu0 0
    %1584 = vmatprep.subr.bf16.mxu0 0
    %1585 = vmatpush1.bf16.msra.mxu0 %v1566
    %1586 = vmatprep.subr.bf16.mxu0 0
    %1587 = vmatpush1.bf16.msra.mxu0 %v1565
    %1588 = vmatprep.subr.bf16.mxu0 0
    %1589 = vmatpush2.bf16.msra.mxu0 0
    %1590 = vmatprep.subr.bf16.mxu0 0
    %1591 = vmatpush2.bf16.msra.mxu0 0
    %1592 = vmatprep.subr.bf16.mxu0 0
    %1593 = vmatpush2.bf16.msra.mxu0 0
    %1594 = vmatprep.subr.bf16.mxu0 0
    %1595 = vmatpush2.bf16.msra.mxu0 0
    %1596 = vmatprep.subr.bf16.mxu0 0
    %1597 = vmatpush2.bf16.msra.mxu0 0
    %1598 = vmatprep.subr.bf16.mxu0 0
    %1599 = vmatpush2.bf16.msra.mxu0 0
    %1600 = vmatprep.subr.bf16.mxu0 0
    %1601 = vmatpush2.bf16.msra.mxu0 0
    %1602 = vmatprep.subr.bf16.mxu0 0
    %1603 = vmatpush2.bf16.msra.mxu0 0
    %1604 = vmatprep.mubr.bf16.mxu0 0
    %1605 = vmatmul.mubr.bf16.gmra.mxu0 %v1570
    %v1606 = vpop.f32.mrf.mxu0
    %v1607 = vadd.f32 0.0, %v1606
    %v1608 = vpop.f32.mrf.mxu0
    %v1609 = vpop.f32.mrf.mxu0
    %v1610 = vadd.f32 0.0, %v1609
    %v1611 = vpop.f32.mrf.mxu0
    %1612 = vdwg.mxu0
    %v1613 = vld [vmem:[%s25] sm:$0x1]
    %v1614 = vld [vmem:[%s26] sm:$0x1]
    %v1615 = vsel %vm117, %v1607, 0.0
    %v1616 = vsel %vm117, %v1610, 0.0
    %v1617 = vadd.f32 %v1615, %v1616
    %v1618 = vrot.slane %v1617, 4
    %v1619 = vadd.f32 %v1617, %v1618
    %v1620 = vrot.slane %v1619, 2
    %v1621 = vadd.f32 %v1619, %v1620
    %v1622 = vrot.slane %v1621, 1
    %v1623 = vadd.f32 %v1621, %v1622
    %v1624 = vmul.f32 %v1623, %v173
    %v1625 = vmul.f32 %v1607, %v1607
    %v1626 = vmul.f32 %v1610, %v1610
    %v1627 = vsel %vm117, %v1625, 0.0
    %v1628 = vsel %vm117, %v1626, 0.0
    %v1629 = vadd.f32 %v1627, %v1628
    %v1630 = vrot.slane %v1629, 4
    %v1631 = vadd.f32 %v1629, %v1630
    %v1632 = vrot.slane %v1631, 2
    %v1633 = vadd.f32 %v1631, %v1632
    %v1634 = vrot.slane %v1633, 1
    %v1635 = vadd.f32 %v1633, %v1634
    %v1636 = vmul.f32 %v1635, %v173
    %v1637 = vmul.f32 %v1624, %v1624
    %v1638 = vsub.f32 %v1636, %v1637
    %v1639 = vmax.f32 %v1638, 0.0
    %v1640 = vsub.f32 %v1607, %v1624
    %v1641 = vsub.f32 %v1610, %v1624
    %v1642 = vadd.f32 %v1639, 1e-05
    %v1643 = vrsqrt.pop %v1642
    %v1644 = vmul.f32 %v1640, %v1643
    %v1645 = vmul.f32 %v1641, %v1643
    %v1647 = vlaneseq
    %v1648 = vshrl.u32 %v1647, 7
    %v1649 = vsub.s32 0, %v1648
    %v1650 = vrot.slane %v1613, %v1649
    %v1652 = vmul.f32 %v1644, %v1650
    %v1653 = vmul.f32 %v1645, %v1650
    %v1655 = vlaneseq
    %v1656 = vshrl.u32 %v1655, 7
    %v1657 = vsub.s32 0, %v1656
    %v1658 = vrot.slane %v1614, %v1657
    %v1660 = vadd.f32 %v1652, %v1658
    %v1661 = vadd.f32 %v1653, %v1658
    %v1662 = vadd.f32 %v1660, %v88
    %v1663 = vadd.f32 %v1661, %v89
    %v1664 = vmax.f32 %v1662, 0.0
    %v1665 = vmax.f32 %v1663, 0.0
    %1666 = vst.msk [vmem:[#allocation2] sm:$0xff] %vm117, %v1664
    %1667 = vst.msk [vmem:[#allocation2 + $0x8] sm:$0xff] %vm117, %v1665
    // Predicated region
    $region110: #{_transformer_block_impl.1} parent=1 // pred_check
      _
    $region111: #{_transformer_block_impl.1} parent=1 // pred_check_branch
      %1669 = sbr.rel (0) target = $region113
    $region112: #{_transformer_block_impl.1} parent=1 // pred_region
      %s1671 = ssub.s32 256, 256
      %1672 = vsyncadd [#allocation3], %s1671
      %s1673 = sshll.u32 [#allocation2], 4
      %s1674 = int_to_ptr.vmem [resolvable:$true] %s1673
      %1679 = dma.vmem_to_hbm [thread:$0]  %s1674, 256, %s27, [#allocation3], 128, 128, 8
    $region113: #{_transformer_block_impl.1} parent=1 // pred_fallthru
      _
    // Predicated region
    $region114: #{_transformer_block_impl.1} parent=1 // pred_check
      _
    $region115: #{_transformer_block_impl.1} parent=1 // pred_check_branch
      %1681 = sbr.rel (0) target = $region117
    $region116: #{_transformer_block_impl.1} parent=1 // pred_region
      %1682 = dma.done [#allocation3], 256
    $region117: #{_transformer_block_impl.1} parent=1 // pred_fallthru
      _
    %1683 = vsyncpa [#allocation3], 1

</llo_original>
